<compile_context>
chip_gen: v5e
topology: v5e:2x2
jax: 0.10.0
libtpu: 0.0.40
codegen_flags: <defaults>
</compile_context>

<pallas_src>
import jax
import jax.numpy as jnp
from jax.experimental import pallas as pl
from jax.experimental.pallas import tpu as pltpu


# ---------------------------------------------------------------------------
# Pallas kernels
# ---------------------------------------------------------------------------

def _conv_relu_pool_kernel(p_ref, w_ref, b_ref, o_ref):
    """Fused conv3x3 + bias + ReLU + 2x2 maxpool for one batch element.

    p_ref: (4, K, M)  -- patch matrix for each of the 4 pool taps
    w_ref: (Cout, K)  -- conv weight, rows = output channel
    b_ref: (Cout, 1)
    o_ref: (Cout, M)  -- pooled activation, M (spatial) lane-dense
    """
    w = w_ref[...]
    acc = jnp.dot(w, p_ref[0], preferred_element_type=jnp.float32)
    for t in range(1, 4):                       # max over the 4 pool taps
        acc = jnp.maximum(
            acc, jnp.dot(w, p_ref[t], preferred_element_type=jnp.float32))
    o_ref[...] = jnp.maximum(acc + b_ref[...], 0.0).astype(o_ref.dtype)


def _mlp_softmax_kernel(x_ref, w1_ref, b1_ref, w2_ref, b2_ref,
                        w3_ref, b3_ref, o_ref):
    """fc1 -> fc2 -> fc3 -> softmax(dim=-1), all fused (everything in VMEM)."""
    h = jnp.dot(x_ref[...], w1_ref[...],
                preferred_element_type=jnp.float32) + b1_ref[...]
    h = jnp.dot(h, w2_ref[...],
                preferred_element_type=jnp.float32) + b2_ref[...]
    logits = jnp.dot(h, w3_ref[...],
                     preferred_element_type=jnp.float32) + b3_ref[...]
    m = jnp.max(logits, axis=-1, keepdims=True)
    e = jnp.exp(logits - m)
    o_ref[...] = (e / jnp.sum(e, axis=-1, keepdims=True)).astype(o_ref.dtype)


# ---------------------------------------------------------------------------
# Wrappers (glue: pool-tap im2col, parameter reshapes)
# ---------------------------------------------------------------------------

def _pool_tap_patches(x):
    """x: [N, C, H, W] -> [N, 4, C*9, ((H-2)//2) * ((W-2)//2)].

    Patch matrices for `maxpool2x2(relu(conv3x3_valid(x)))` evaluated directly
    at the *pooled* output positions.  Axis 1 enumerates the 4 pool taps
    (dh, dw) in {0,1}^2; rows are ordered (cin, kh, kw) to match
    w.reshape(Cout, Cin*9); columns are (oh, ow) row-major per image.
    """
    n, c, h, w = x.shape
    assert (h - 2) % 2 == 0 and (w - 2) % 2 == 0, "pool needs even conv output"
    po, qo = (h - 2) // 2, (w - 2) // 2          # pooled output size
    taps = []
    for dh in range(2):
        for dw in range(2):
            cols = [
                x[:, :,
                  dh + kh: dh + kh + 2 * po: 2,
                  dw + kw: dw + kw + 2 * qo: 2]
                for kh in range(3) for kw in range(3)
            ]                                    # 9 x [N, C, po, qo]
            t = jnp.stack(cols, axis=2)          # [N, C, 9, po, qo]
            taps.append(t.reshape(n, c * 9, po * qo))
    return jnp.stack(taps, axis=1)               # [N, 4, C*9, po*qo]


def conv_relu_pool(patches, w2d, b2d):
    """patches: [N, 4, K, M], w2d: [Cout, K], b2d: [Cout, 1] -> [N, Cout, M]."""
    n, _, k, m = patches.shape
    cout = w2d.shape[0]
    return pl.pallas_call(
        _conv_relu_pool_kernel,
        out_shape=jax.ShapeDtypeStruct((n, cout, m), jnp.float32),
        grid_spec=pltpu.PrefetchScalarGridSpec(
            num_scalar_prefetch=0,
            grid=(n,),                           # one batch element per step
            in_specs=[
                # full per-image patch block; batch dim squeezed
                pl.BlockSpec((None, 4, k, m), lambda i: (i, 0, 0, 0)),
                # weights/bias: constant index_map -> stay VMEM-resident
                pl.BlockSpec((cout, k), lambda i: (0, 0)),
                pl.BlockSpec((cout, 1), lambda i: (0, 0)),
            ],
            out_specs=pl.BlockSpec((None, cout, m), lambda i: (i, 0, 0)),
        ),
        compiler_params=pltpu.CompilerParams(
            dimension_semantics=("parallel",)),   # megacore sharding on v7x
    )(patches, w2d, b2d)


def mlp_softmax(x, w1, b1, w2, b2, w3, b3):
    """x: [N, 2352] -> softmax(fc3(fc2(fc1(x)))) : [N, 5].

    N is tiny (a handful of rows), so a single VMEM-resident block is optimal;
    a grid over N row-tiles only pays off for large batches.
    """
    n = x.shape[0]
    return pl.pallas_call(
        _mlp_softmax_kernel,
        out_shape=jax.ShapeDtypeStruct((n, w3.shape[1]), jnp.float32),
    )(x, w1, b1.reshape(1, -1), w2, b2.reshape(1, -1), w3, b3.reshape(1, -1))


# ---------------------------------------------------------------------------
# Parameter construction (deterministic, PyTorch-style inits)
# ---------------------------------------------------------------------------

def _xavier_uniform(key, shape, fan_in, fan_out):
    limit = (6.0 / (fan_in + fan_out)) ** 0.5
    return jax.random.uniform(key, shape, jnp.float32, -limit, limit)


def _torch_default(key, shape, fan_in):
    limit = 1.0 / (fan_in ** 0.5)
    return jax.random.uniform(key, shape, jnp.float32, -limit, limit)


def init_params(key):
    ks = jax.random.split(key, 10)
    p = {}
    # conv1: 3 -> 6, k=3 (xavier_uniform weights, torch-default bias)
    p["w_c1"] = _xavier_uniform(ks[0], (6, 3, 3, 3), fan_in=3 * 9, fan_out=6 * 9)
    p["b_c1"] = _torch_default(ks[1], (6,), fan_in=3 * 9)
    # conv2: 6 -> 12, k=3
    p["w_c2"] = _xavier_uniform(ks[2], (12, 6, 3, 3), fan_in=6 * 9, fan_out=12 * 9)
    p["b_c2"] = _torch_default(ks[3], (12,), fan_in=6 * 9)
    # fc layers stored as [in, out]
    p["w_f1"] = _torch_default(ks[4], (2352, 120), fan_in=2352)
    p["b_f1"] = _torch_default(ks[5], (120,), fan_in=2352)
    p["w_f2"] = _torch_default(ks[6], (120, 84), fan_in=120)
    p["b_f2"] = _torch_default(ks[7], (84,), fan_in=120)
    p["w_f3"] = _torch_default(ks[8], (84, 5), fan_in=84)
    p["b_f3"] = _torch_default(ks[9], (5,), fan_in=84)
    return p


# ---------------------------------------------------------------------------
# Full forward pass (SimpleNet.forward)
# ---------------------------------------------------------------------------

@jax.jit
def simple_net_forward(x, params):
    n = x.shape[0]
    # conv1 + relu + maxpool(2), fused:  [N,3,62,62] -> [N, 6, 30*30]
    p1 = _pool_tap_patches(x)                                  # [N, 4, 27, 900]
    a1 = conv_relu_pool(p1,
                        params["w_c1"].reshape(6, 3 * 9),
                        params["b_c1"].reshape(6, 1))          # [N, 6, 900]
    # conv2 + relu + maxpool(2), fused:  [N,6,30,30] -> [N, 12, 14*14]
    p2 = _pool_tap_patches(a1.reshape(n, 6, 30, 30))           # [N, 4, 54, 196]
    a2 = conv_relu_pool(p2,
                        params["w_c2"].reshape(12, 6 * 9),
                        params["b_c2"].reshape(12, 1))         # [N, 12, 196]
    # flatten in (c, h, w) order == torch .view(-1, 2352) on NCHW (free reshape)
    flat = a2.reshape(n, 12 * 14 * 14)                         # [N, 2352]
    # fc1 -> fc2 -> fc3 -> softmax(dim=1), fused
    return mlp_softmax(flat, params["w_f1"], params["b_f1"],
                       params["w_f2"], params["b_f2"],
                       params["w_f3"], params["b_f3"])         # [N, 5]


if __name__ == "__main__":
    key = jax.random.PRNGKey(0)
    k_x, k_p = jax.random.split(key)
    x = jax.random.normal(k_x, (2, 3, 62, 62), jnp.float32)    # NCHW
    params = init_params(k_p)

    out = simple_net_forward(x, params)
    out = jax.block_until_ready(out)

    assert out.shape == (2, 5)
    # softmax rows must sum to 1
    assert bool(jnp.allclose(jnp.sum(out, axis=1), 1.0, atol=1e-5))
    print("KERNEL_OK")
</pallas_src>

<mosaic_0001>
module attributes {stable_mosaic.version = 11 : i64} {
  func.func @_conv_relu_pool_kernel(%arg0: i32, %arg1: memref<1x4x27x900xf32, #tpu.memory_space<vmem>>, %arg2: memref<6x27xf32, #tpu.memory_space<vmem>>, %arg3: memref<6x1xf32, #tpu.memory_space<vmem>>, %arg4: memref<1x6x900xf32, #tpu.memory_space<vmem>>) attributes {dimension_semantics = [#tpu.dimension_semantics<parallel>], iteration_bounds = array<i64: 2>, scalar_prefetch = 0 : i64, scratch_operands = 0 : i64, tpu.core_type = #tpu.core_type<tc>, window_params = [{transform_indices = @transform_0, window_bounds = array<i64: 1, 4, 27, 900>}, {pipeline_mode = #tpu.pipeline_mode<synchronous>, transform_indices = @transform_1, window_bounds = array<i64: 6, 27>}, {pipeline_mode = #tpu.pipeline_mode<synchronous>, transform_indices = @transform_2, window_bounds = array<i64: 6, 1>}, {transform_indices = @transform_3, window_bounds = array<i64: 1, 6, 900>}]} {
    %c0 = arith.constant 0 : index
    %c0_0 = arith.constant 0 : index
    %0 = vector.load %arg2[%c0, %c0_0] : memref<6x27xf32, #tpu.memory_space<vmem>>, vector<6x27xf32>
    %c0_1 = arith.constant 0 : index
    %c0_2 = arith.constant 0 : index
    %c0_3 = arith.constant 0 : index
    %c0_4 = arith.constant 0 : index
    %1 = vector.load %arg1[%c0_1, %c0_2, %c0_3, %c0_4] : memref<1x4x27x900xf32, #tpu.memory_space<vmem>>, vector<1x1x27x900xf32>
    %2 = vector.shape_cast %1 : vector<1x1x27x900xf32> to vector<27x900xf32>
    %cst = arith.constant dense<0.000000e+00> : vector<6x900xf32>
    %3 = tpu.matmul %0, %2, %cst {dimension_numbers = #tpu.dot_dimension_numbers<[1], [0], [0], [1], [0, 0, 1, 1], [], []>} : vector<6x27xf32>, vector<27x900xf32>, vector<6x900xf32> -> vector<6x900xf32>
    %c0_5 = arith.constant 0 : index
    %c1 = arith.constant 1 : index
    %c0_6 = arith.constant 0 : index
    %c0_7 = arith.constant 0 : index
    %4 = vector.load %arg1[%c0_5, %c1, %c0_6, %c0_7] : memref<1x4x27x900xf32, #tpu.memory_space<vmem>>, vector<1x1x27x900xf32>
    %5 = vector.shape_cast %4 : vector<1x1x27x900xf32> to vector<27x900xf32>
    %cst_8 = arith.constant dense<0.000000e+00> : vector<6x900xf32>
    %6 = tpu.matmul %0, %5, %cst_8 {dimension_numbers = #tpu.dot_dimension_numbers<[1], [0], [0], [1], [0, 0, 1, 1], [], []>} : vector<6x27xf32>, vector<27x900xf32>, vector<6x900xf32> -> vector<6x900xf32>
    %7 = arith.maximumf %3, %6 : vector<6x900xf32>
    %c0_9 = arith.constant 0 : index
    %c2 = arith.constant 2 : index
    %c0_10 = arith.constant 0 : index
    %c0_11 = arith.constant 0 : index
    %8 = vector.load %arg1[%c0_9, %c2, %c0_10, %c0_11] : memref<1x4x27x900xf32, #tpu.memory_space<vmem>>, vector<1x1x27x900xf32>
    %9 = vector.shape_cast %8 : vector<1x1x27x900xf32> to vector<27x900xf32>
    %cst_12 = arith.constant dense<0.000000e+00> : vector<6x900xf32>
    %10 = tpu.matmul %0, %9, %cst_12 {dimension_numbers = #tpu.dot_dimension_numbers<[1], [0], [0], [1], [0, 0, 1, 1], [], []>} : vector<6x27xf32>, vector<27x900xf32>, vector<6x900xf32> -> vector<6x900xf32>
    %11 = arith.maximumf %7, %10 : vector<6x900xf32>
    %c0_13 = arith.constant 0 : index
    %c3 = arith.constant 3 : index
    %c0_14 = arith.constant 0 : index
    %c0_15 = arith.constant 0 : index
    %12 = vector.load %arg1[%c0_13, %c3, %c0_14, %c0_15] : memref<1x4x27x900xf32, #tpu.memory_space<vmem>>, vector<1x1x27x900xf32>
    %13 = vector.shape_cast %12 : vector<1x1x27x900xf32> to vector<27x900xf32>
    %cst_16 = arith.constant dense<0.000000e+00> : vector<6x900xf32>
    %14 = tpu.matmul %0, %13, %cst_16 {dimension_numbers = #tpu.dot_dimension_numbers<[1], [0], [0], [1], [0, 0, 1, 1], [], []>} : vector<6x27xf32>, vector<27x900xf32>, vector<6x900xf32> -> vector<6x900xf32>
    %15 = arith.maximumf %11, %14 : vector<6x900xf32>
    %c0_17 = arith.constant 0 : index
    %c0_18 = arith.constant 0 : index
    %16 = vector.load %arg3[%c0_17, %c0_18] : memref<6x1xf32, #tpu.memory_space<vmem>>, vector<6x1xf32>
    %17 = vector.broadcast %16 : vector<6x1xf32> to vector<6x900xf32>
    %18 = arith.addf %15, %17 : vector<6x900xf32>
    %cst_19 = arith.constant 0.000000e+00 : f32
    %19 = vector.broadcast %cst_19 : f32 to vector<6x900xf32>
    %20 = arith.maximumf %18, %19 : vector<6x900xf32>
    %c0_20 = arith.constant 0 : index
    %c0_21 = arith.constant 0 : index
    %c0_22 = arith.constant 0 : index
    %21 = vector.load %arg4[%c0_20, %c0_21, %c0_22] : memref<1x6x900xf32, #tpu.memory_space<vmem>>, vector<1x6x900xf32>
    %22 = vector.shape_cast %21 : vector<1x6x900xf32> to vector<6x900xf32>
    %23 = vector.shape_cast %20 : vector<6x900xf32> to vector<1x6x900xf32>
    tpu.vector_store %arg4[%c0_20, %c0_21, %c0_22], %23 {strides = array<i32>} : memref<1x6x900xf32, #tpu.memory_space<vmem>>, vector<1x6x900xf32>,
    return
  }
  func.func @transform_0(%arg0: i32) -> (i32, i32, i32, i32) {
    %c0_i32 = arith.constant 0 : i32
    %c0_i32_0 = arith.constant 0 : i32
    %c0_i32_1 = arith.constant 0 : i32
    %c0_i32_2 = arith.constant 0 : i32
    return %arg0, %c0_i32, %c0_i32_0, %c0_i32_1 : i32, i32, i32, i32
  }
  func.func @transform_1(%arg0: i32) -> (i32, i32) {
    %c0_i32 = arith.constant 0 : i32
    %c0_i32_0 = arith.constant 0 : i32
    %c0_i32_1 = arith.constant 0 : i32
    return %c0_i32, %c0_i32_0 : i32, i32
  }
  func.func @transform_2(%arg0: i32) -> (i32, i32) {
    %c0_i32 = arith.constant 0 : i32
    %c0_i32_0 = arith.constant 0 : i32
    %c0_i32_1 = arith.constant 0 : i32
    return %c0_i32, %c0_i32_0 : i32, i32
  }
  func.func @transform_3(%arg0: i32) -> (i32, i32, i32) {
    %c0_i32 = arith.constant 0 : i32
    %c0_i32_0 = arith.constant 0 : i32
    %c0_i32_1 = arith.constant 0 : i32
    return %arg0, %c0_i32, %c0_i32_0 : i32, i32, i32
  }
}

module attributes {stable_mosaic.version = 11 : i64} {
  func.func @_conv_relu_pool_kernel(%arg0: i32, %arg1: memref<1x4x54x196xf32, #tpu.memory_space<vmem>>, %arg2: memref<12x54xf32, #tpu.memory_space<vmem>>, %arg3: memref<12x1xf32, #tpu.memory_space<vmem>>, %arg4: memref<1x12x196xf32, #tpu.memory_space<vmem>>) attributes {dimension_semantics = [#tpu.dimension_semantics<parallel>], iteration_bounds = array<i64: 2>, scalar_prefetch = 0 : i64, scratch_operands = 0 : i64, tpu.core_type = #tpu.core_type<tc>, window_params = [{transform_indices = @transform_0, window_bounds = array<i64: 1, 4, 54, 196>}, {pipeline_mode = #tpu.pipeline_mode<synchronous>, transform_indices = @transform_1, window_bounds = array<i64: 12, 54>}, {pipeline_mode = #tpu.pipeline_mode<synchronous>, transform_indices = @transform_2, window_bounds = array<i64: 12, 1>}, {transform_indices = @transform_3, window_bounds = array<i64: 1, 12, 196>}]} {
    %c0 = arith.constant 0 : index
    %c0_0 = arith.constant 0 : index
    %0 = vector.load %arg2[%c0, %c0_0] : memref<12x54xf32, #tpu.memory_space<vmem>>, vector<12x54xf32>
    %c0_1 = arith.constant 0 : index
    %c0_2 = arith.constant 0 : index
    %c0_3 = arith.constant 0 : index
    %c0_4 = arith.constant 0 : index
    %1 = vector.load %arg1[%c0_1, %c0_2, %c0_3, %c0_4] : memref<1x4x54x196xf32, #tpu.memory_space<vmem>>, vector<1x1x54x196xf32>
    %2 = vector.shape_cast %1 : vector<1x1x54x196xf32> to vector<54x196xf32>
    %cst = arith.constant dense<0.000000e+00> : vector<12x196xf32>
    %3 = tpu.matmul %0, %2, %cst {dimension_numbers = #tpu.dot_dimension_numbers<[1], [0], [0], [1], [0, 0, 1, 1], [], []>} : vector<12x54xf32>, vector<54x196xf32>, vector<12x196xf32> -> vector<12x196xf32>
    %c0_5 = arith.constant 0 : index
    %c1 = arith.constant 1 : index
    %c0_6 = arith.constant 0 : index
    %c0_7 = arith.constant 0 : index
    %4 = vector.load %arg1[%c0_5, %c1, %c0_6, %c0_7] : memref<1x4x54x196xf32, #tpu.memory_space<vmem>>, vector<1x1x54x196xf32>
    %5 = vector.shape_cast %4 : vector<1x1x54x196xf32> to vector<54x196xf32>
    %cst_8 = arith.constant dense<0.000000e+00> : vector<12x196xf32>
    %6 = tpu.matmul %0, %5, %cst_8 {dimension_numbers = #tpu.dot_dimension_numbers<[1], [0], [0], [1], [0, 0, 1, 1], [], []>} : vector<12x54xf32>, vector<54x196xf32>, vector<12x196xf32> -> vector<12x196xf32>
    %7 = arith.maximumf %3, %6 : vector<12x196xf32>
    %c0_9 = arith.constant 0 : index
    %c2 = arith.constant 2 : index
    %c0_10 = arith.constant 0 : index
    %c0_11 = arith.constant 0 : index
    %8 = vector.load %arg1[%c0_9, %c2, %c0_10, %c0_11] : memref<1x4x54x196xf32, #tpu.memory_space<vmem>>, vector<1x1x54x196xf32>
    %9 = vector.shape_cast %8 : vector<1x1x54x196xf32> to vector<54x196xf32>
    %cst_12 = arith.constant dense<0.000000e+00> : vector<12x196xf32>
    %10 = tpu.matmul %0, %9, %cst_12 {dimension_numbers = #tpu.dot_dimension_numbers<[1], [0], [0], [1], [0, 0, 1, 1], [], []>} : vector<12x54xf32>, vector<54x196xf32>, vector<12x196xf32> -> vector<12x196xf32>
    %11 = arith.maximumf %7, %10 : vector<12x196xf32>
    %c0_13 = arith.constant 0 : index
    %c3 = arith.constant 3 : index
    %c0_14 = arith.constant 0 : index
    %c0_15 = arith.constant 0 : index
    %12 = vector.load %arg1[%c0_13, %c3, %c0_14, %c0_15] : memref<1x4x54x196xf32, #tpu.memory_space<vmem>>, vector<1x1x54x196xf32>
    %13 = vector.shape_cast %12 : vector<1x1x54x196xf32> to vector<54x196xf32>
    %cst_16 = arith.constant dense<0.000000e+00> : vector<12x196xf32>
    %14 = tpu.matmul %0, %13, %cst_16 {dimension_numbers = #tpu.dot_dimension_numbers<[1], [0], [0], [1], [0, 0, 1, 1], [], []>} : vector<12x54xf32>, vector<54x196xf32>, vector<12x196xf32> -> vector<12x196xf32>
    %15 = arith.maximumf %11, %14 : vector<12x196xf32>
    %c0_17 = arith.constant 0 : index
    %c0_18 = arith.constant 0 : index
    %16 = vector.load %arg3[%c0_17, %c0_18] : memref<12x1xf32, #tpu.memory_space<vmem>>, vector<12x1xf32>
    %17 = vector.broadcast %16 : vector<12x1xf32> to vector<12x196xf32>
    %18 = arith.addf %15, %17 : vector<12x196xf32>
    %cst_19 = arith.constant 0.000000e+00 : f32
    %19 = vector.broadcast %cst_19 : f32 to vector<12x196xf32>
    %20 = arith.maximumf %18, %19 : vector<12x196xf32>
    %c0_20 = arith.constant 0 : index
    %c0_21 = arith.constant 0 : index
    %c0_22 = arith.constant 0 : index
    %21 = vector.load %arg4[%c0_20, %c0_21, %c0_22] : memref<1x12x196xf32, #tpu.memory_space<vmem>>, vector<1x12x196xf32>
    %22 = vector.shape_cast %21 : vector<1x12x196xf32> to vector<12x196xf32>
    %23 = vector.shape_cast %20 : vector<12x196xf32> to vector<1x12x196xf32>
    tpu.vector_store %arg4[%c0_20, %c0_21, %c0_22], %23 {strides = array<i32>} : memref<1x12x196xf32, #tpu.memory_space<vmem>>, vector<1x12x196xf32>,
    return
  }
  func.func @transform_0(%arg0: i32) -> (i32, i32, i32, i32) {
    %c0_i32 = arith.constant 0 : i32
    %c0_i32_0 = arith.constant 0 : i32
    %c0_i32_1 = arith.constant 0 : i32
    %c0_i32_2 = arith.constant 0 : i32
    return %arg0, %c0_i32, %c0_i32_0, %c0_i32_1 : i32, i32, i32, i32
  }
  func.func @transform_1(%arg0: i32) -> (i32, i32) {
    %c0_i32 = arith.constant 0 : i32
    %c0_i32_0 = arith.constant 0 : i32
    %c0_i32_1 = arith.constant 0 : i32
    return %c0_i32, %c0_i32_0 : i32, i32
  }
  func.func @transform_2(%arg0: i32) -> (i32, i32) {
    %c0_i32 = arith.constant 0 : i32
    %c0_i32_0 = arith.constant 0 : i32
    %c0_i32_1 = arith.constant 0 : i32
    return %c0_i32, %c0_i32_0 : i32, i32
  }
  func.func @transform_3(%arg0: i32) -> (i32, i32, i32) {
    %c0_i32 = arith.constant 0 : i32
    %c0_i32_0 = arith.constant 0 : i32
    %c0_i32_1 = arith.constant 0 : i32
    return %arg0, %c0_i32, %c0_i32_0 : i32, i32, i32
  }
}

module attributes {stable_mosaic.version = 11 : i64} {
  func.func @_mlp_softmax_kernel(%arg0: memref<2x2352xf32, #tpu.memory_space<vmem>>, %arg1: memref<2352x120xf32, #tpu.memory_space<vmem>>, %arg2: memref<1x120xf32, #tpu.memory_space<vmem>>, %arg3: memref<120x84xf32, #tpu.memory_space<vmem>>, %arg4: memref<1x84xf32, #tpu.memory_space<vmem>>, %arg5: memref<84x5xf32, #tpu.memory_space<vmem>>, %arg6: memref<1x5xf32, #tpu.memory_space<vmem>>, %arg7: memref<2x5xf32, #tpu.memory_space<vmem>>) attributes {dimension_semantics = [], scalar_prefetch = 0 : i64, scratch_operands = 0 : i64, tpu.core_type = #tpu.core_type<tc>} {
    %c0 = arith.constant 0 : index
    %c0_0 = arith.constant 0 : index
    %0 = vector.load %arg0[%c0, %c0_0] : memref<2x2352xf32, #tpu.memory_space<vmem>>, vector<2x2352xf32>
    %c0_1 = arith.constant 0 : index
    %c0_2 = arith.constant 0 : index
    %1 = vector.load %arg1[%c0_1, %c0_2] : memref<2352x120xf32, #tpu.memory_space<vmem>>, vector<2352x120xf32>
    %cst = arith.constant dense<0.000000e+00> : vector<2x120xf32>
    %2 = tpu.matmul %0, %1, %cst {dimension_numbers = #tpu.dot_dimension_numbers<[1], [0], [0], [1], [0, 0, 1, 1], [], []>} : vector<2x2352xf32>, vector<2352x120xf32>, vector<2x120xf32> -> vector<2x120xf32>
    %c0_3 = arith.constant 0 : index
    %c0_4 = arith.constant 0 : index
    %3 = vector.load %arg2[%c0_3, %c0_4] : memref<1x120xf32, #tpu.memory_space<vmem>>, vector<1x120xf32>
    %4 = vector.broadcast %3 : vector<1x120xf32> to vector<2x120xf32>
    %5 = arith.addf %2, %4 : vector<2x120xf32>
    %c0_5 = arith.constant 0 : index
    %c0_6 = arith.constant 0 : index
    %6 = vector.load %arg3[%c0_5, %c0_6] : memref<120x84xf32, #tpu.memory_space<vmem>>, vector<120x84xf32>
    %cst_7 = arith.constant dense<0.000000e+00> : vector<2x84xf32>
    %7 = tpu.matmul %5, %6, %cst_7 {dimension_numbers = #tpu.dot_dimension_numbers<[1], [0], [0], [1], [0, 0, 1, 1], [], []>} : vector<2x120xf32>, vector<120x84xf32>, vector<2x84xf32> -> vector<2x84xf32>
    %c0_8 = arith.constant 0 : index
    %c0_9 = arith.constant 0 : index
    %8 = vector.load %arg4[%c0_8, %c0_9] : memref<1x84xf32, #tpu.memory_space<vmem>>, vector<1x84xf32>
    %9 = vector.broadcast %8 : vector<1x84xf32> to vector<2x84xf32>
    %10 = arith.addf %7, %9 : vector<2x84xf32>
    %c0_10 = arith.constant 0 : index
    %c0_11 = arith.constant 0 : index
    %11 = vector.load %arg5[%c0_10, %c0_11] : memref<84x5xf32, #tpu.memory_space<vmem>>, vector<84x5xf32>
    %cst_12 = arith.constant dense<0.000000e+00> : vector<2x5xf32>
    %12 = tpu.matmul %10, %11, %cst_12 {dimension_numbers = #tpu.dot_dimension_numbers<[1], [0], [0], [1], [0, 0, 1, 1], [], []>} : vector<2x84xf32>, vector<84x5xf32>, vector<2x5xf32> -> vector<2x5xf32>
    %c0_13 = arith.constant 0 : index
    %c0_14 = arith.constant 0 : index
    %13 = vector.load %arg6[%c0_13, %c0_14] : memref<1x5xf32, #tpu.memory_space<vmem>>, vector<1x5xf32>
    %14 = vector.broadcast %13 : vector<1x5xf32> to vector<2x5xf32>
    %15 = arith.addf %12, %14 : vector<2x5xf32>
    %cst_15 = arith.constant dense<0xFF800000> : vector<2xf32>
    %16 = vector.multi_reduction <maximumf>, %15, %cst_15 [1] : vector<2x5xf32> to vector<2xf32>
    %17 = vector.shape_cast %16 : vector<2xf32> to vector<2x1xf32>
    %18 = vector.broadcast %17 : vector<2x1xf32> to vector<2x5xf32>
    %19 = arith.subf %15, %18 : vector<2x5xf32>
    %20 = math.exp %19 : vector<2x5xf32>
    %cst_16 = arith.constant dense<0.000000e+00> : vector<2xf32>
    %21 = vector.multi_reduction <add>, %20, %cst_16 [1] : vector<2x5xf32> to vector<2xf32>
    %22 = vector.shape_cast %21 : vector<2xf32> to vector<2x1xf32>
    %23 = vector.broadcast %22 : vector<2x1xf32> to vector<2x5xf32>
    %24 = arith.divf %20, %23 : vector<2x5xf32>
    %c0_17 = arith.constant 0 : index
    %c0_18 = arith.constant 0 : index
    %25 = vector.load %arg7[%c0_17, %c0_18] : memref<2x5xf32, #tpu.memory_space<vmem>>, vector<2x5xf32>
    tpu.vector_store %arg7[%c0_17, %c0_18], %24 {strides = array<i32>} : memref<2x5xf32, #tpu.memory_space<vmem>>, vector<2x5xf32>,
    return
  }
}

</mosaic_0001>

<llo_original>
// kernel: simple_net_forward.3
$region0: #{simple_net_forward.3}
  #allocation0 [shape = 'u32[]', space=smem, size = 0x4, offset = 0x4, fixed_abs, tag = 'smem constant byte address 0x4 - core index']
  #allocation1 [shape = 'u32[72,128]{1,0:T(1,128)}', space=vmem, size = 0x9000, scoped, tag = 'internal scratch']
  %s0 = inlined_call_operand.vmem [shape: f32[2,4,27,900], index: 0, kind: input, shape index: {}]
  %s1 = inlined_call_operand.vmem [shape: f32[6,27], index: 1, kind: input, shape index: {}]
  %s2 = inlined_call_operand.vmem [shape: f32[6,1], index: 2, kind: input, shape index: {}]
  %s3 = inlined_call_operand.vmem [shape: f32[2,6,900], index: 3, kind: output, shape index: {}]
  %s4 = sld [smem:[#allocation0]]
  $region45: #{simple_net_forward.3} parent=0
    _
  %s6 = ssub.s32 1, %s4
  %s7 = scalar_select 0, %s6, %s4
  loop: start=0, step=1, limit=4
  $region2: #{simple_net_forward.3} parent=0 // loop_pre_header
    _
  $region3: #{simple_net_forward.3} parent=0 // loop_header
    %s9 = sphi 0, %s13
    %p10 = scmp.ge.s32.totalorder %s9, 4
    %s19 = sphi 0, %s21
    %s22 = sphi 0, %s19
    %s23 = sphi 0, %s22
    %s39 = sphi 0, %s23
    %s43 = sphi 0, %s43
    %s45 = sphi 0, %s43
    %s46 = sphi 0, %s45
    %s60 = sphi 0, %s46
    %s64 = sphi 0, %s64
    %s66 = sphi 0, %s64
    %s67 = sphi 0, %s66
    %s81 = sphi 0, %s67
    %s87 = sphi 0, %s89
    %s90 = sphi 0, %s87
    %s91 = sphi 0, %s90
    %s107 = sphi 0, %s91
  $region4: #{simple_net_forward.3} parent=0 // loop_header_branch
    %12 = sbr.rel (%p10) target = $region8
  $region5: #{simple_net_forward.3} parent=0 // loop_body
    %s14 = ssub.s32 %s9, 1
    %s15 = ssub.s32 %s9, 2
    %s16 = sadd.s32 %s9, 1
    %s17 = ssub.s32 %s9, %s16
    %p18 = scmp.eq.s32.totalorder %s17, 0
    %s20 = sadd.s32 %s19, 1
    %s21 = scalar_select %p18, %s19, %s20
    %p24 = pneg %p18
    %p25 = scmp.eq.s32.totalorder %s9, 1
    %p26 = por %p24, %p25
    %p27 = scmp.ne.s32.totalorder %s19, %s22
    %p28 = scmp.eq.s32.totalorder %s9, 0
    %p29 = por %p27, %p28
    %p30 = scmp.ne.s32.totalorder %s19, %s22
    %p31 = scmp.eq.s32.totalorder %s14, 1
    %p32 = por %p30, %p31
    %p33 = scmp.ne.s32.totalorder %s22, %s23
    %p34 = scmp.eq.s32.totalorder %s14, 0
    %p35 = por %p33, %p34
    %p36 = scmp.ne.s32.totalorder %s22, %s23
    %p37 = scmp.eq.s32.totalorder %s15, 1
    %p38 = por %p36, %p37
    %p40 = scmp.ne.s32.totalorder %s23, %s39
    %p41 = scmp.eq.s32.totalorder %s15, 0
    %p42 = por %p40, %p41
    %s44 = sadd.s32 %s43, 1
    %p47 = scmp.eq.s32.totalorder %s9, 1
    %p48 = scmp.ne.s32.totalorder %s43, %s45
    %p49 = scmp.eq.s32.totalorder %s9, 0
    %p50 = por %p48, %p49
    %p51 = scmp.ne.s32.totalorder %s43, %s45
    %p52 = scmp.eq.s32.totalorder %s14, 1
    %p53 = por %p51, %p52
    %p54 = scmp.ne.s32.totalorder %s45, %s46
    %p55 = scmp.eq.s32.totalorder %s14, 0
    %p56 = por %p54, %p55
    %p57 = scmp.ne.s32.totalorder %s45, %s46
    %p58 = scmp.eq.s32.totalorder %s15, 1
    %p59 = por %p57, %p58
    %p61 = scmp.ne.s32.totalorder %s46, %s60
    %p62 = scmp.eq.s32.totalorder %s15, 0
    %p63 = por %p61, %p62
    %s65 = sadd.s32 %s64, 1
    %p68 = scmp.eq.s32.totalorder %s9, 1
    %p69 = scmp.ne.s32.totalorder %s64, %s66
    %p70 = scmp.eq.s32.totalorder %s9, 0
    %p71 = por %p69, %p70
    %p72 = scmp.ne.s32.totalorder %s64, %s66
    %p73 = scmp.eq.s32.totalorder %s14, 1
    %p74 = por %p72, %p73
    %p75 = scmp.ne.s32.totalorder %s66, %s67
    %p76 = scmp.eq.s32.totalorder %s14, 0
    %p77 = por %p75, %p76
    %p78 = scmp.ne.s32.totalorder %s66, %s67
    %p79 = scmp.eq.s32.totalorder %s15, 1
    %p80 = por %p78, %p79
    %p82 = scmp.ne.s32.totalorder %s67, %s81
    %p83 = scmp.eq.s32.totalorder %s15, 0
    %p84 = por %p82, %p83
    %s85 = ssub.s32 %s9, %s16
    %p86 = scmp.eq.s32.totalorder %s85, 0
    %s88 = sadd.s32 %s87, 1
    %s89 = scalar_select %p86, %s87, %s88
    %p92 = pneg %p86
    %p93 = scmp.eq.s32.totalorder %s9, 1
    %p94 = por %p92, %p93
    %p95 = scmp.ne.s32.totalorder %s87, %s90
    %p96 = scmp.eq.s32.totalorder %s9, 0
    %p97 = por %p95, %p96
    %p98 = scmp.ne.s32.totalorder %s87, %s90
    %p99 = scmp.eq.s32.totalorder %s14, 1
    %p100 = por %p98, %p99
    %p101 = scmp.ne.s32.totalorder %s90, %s91
    %p102 = scmp.eq.s32.totalorder %s14, 0
    %p103 = por %p101, %p102
    %p104 = scmp.ne.s32.totalorder %s90, %s91
    %p105 = scmp.eq.s32.totalorder %s15, 1
    %p106 = por %p104, %p105
    %p108 = scmp.ne.s32.totalorder %s91, %s107
    %p109 = scmp.eq.s32.totalorder %s15, 0
    %p110 = por %p108, %p109
    %p111 = scmp.le.s32.totalorder 1, %s9
    %p112 = scmp.lt.s32.totalorder %s9, 3
    %p113 = pnand %p111, %p112
    %p114 = pneg %p113
    // Predicated region
    $region9: #{simple_net_forward.3} parent=5 // pred_check
      _
    $region10: #{simple_net_forward.3} parent=5 // pred_check_branch
      %116 = sbr.rel (%p113) target = $region12
    $region11: #{simple_net_forward.3} parent=5 // pred_region
      %s117 = ssub.s32 %s9, 1
      // Predicated region
      $region13: #{simple_net_forward.3} parent=11 // pred_check
        %p118 = pneg %p56
      $region14: #{simple_net_forward.3} parent=11 // pred_check_branch
        %120 = sbr.rel (%p118) target = $region16
      $region15: #{simple_net_forward.3} parent=11 // pred_region
        _
      $region16: #{simple_net_forward.3} parent=11 // pred_fallthru
        _
      // Predicated region
      $region17: #{simple_net_forward.3} parent=11 // pred_check
        %p121 = pneg %p77
      $region18: #{simple_net_forward.3} parent=11 // pred_check_branch
        %123 = sbr.rel (%p121) target = $region20
      $region19: #{simple_net_forward.3} parent=11 // pred_region
        _
      $region20: #{simple_net_forward.3} parent=11 // pred_fallthru
        _
    $region12: #{simple_net_forward.3} parent=5 // pred_fallthru
      _
    %p124 = scmp.lt.s32.totalorder %s9, 2
    // Predicated region
    $region21: #{simple_net_forward.3} parent=5 // pred_check
      %p125 = pneg %p124
    $region22: #{simple_net_forward.3} parent=5 // pred_check_branch
      %127 = sbr.rel (%p125) target = $region24
    $region23: #{simple_net_forward.3} parent=5 // pred_region
      // Predicated region
      $region25: #{simple_net_forward.3} parent=23 // pred_check
        %p128 = pneg %p29
      $region26: #{simple_net_forward.3} parent=23 // pred_check_branch
        %130 = sbr.rel (%p128) target = $region28
      $region27: #{simple_net_forward.3} parent=23 // pred_region
        %p131 = scmp.lt.s32.totalorder %s9, 1
        %s132 = scalar_select %p131, %s9, 1
        %s133 = smul.addr %s132, 128
        %s134 = smul.addr %s133, 8
        %s135 = scalar_lea.vmem %s0, %s134
      $region28: #{simple_net_forward.3} parent=23 // pred_fallthru
        _
    $region24: #{simple_net_forward.3} parent=5 // pred_fallthru
      _
    %p136 = scmp.le.s32.totalorder 1, %s9
    %p137 = scmp.lt.s32.totalorder %s9, 3
    %p138 = pnand %p136, %p137
    %p139 = pneg %p138
    // Predicated region
    $region29: #{simple_net_forward.3} parent=5 // pred_check
      _
    $region30: #{simple_net_forward.3} parent=5 // pred_check_branch
      %141 = sbr.rel (%p138) target = $region32
    $region31: #{simple_net_forward.3} parent=5 // pred_region
      %s142 = ssub.s32 %s9, 1
      %p143 = scmp.lt.s32.totalorder %s14, 1
      %s144 = scalar_select %p143, %s14, 1
      %s145 = smul.addr %s144, 128
      %s146 = smul.addr %s145, 8
      %s147 = scalar_lea.vmem %s0, %s146
      %p148 = pneg %p35
      %p149 = pneg %p32
      %p150 = pneg %p56
      %p151 = pneg %p53
      %p152 = pneg %p77
      %p153 = pneg %p74
      %p154 = pneg %p103
      %p155 = pneg %p100
      %p156 = scmp.lt.s32.totalorder %s14, 1
      %s157 = scalar_select %p156, %s14, 1
      %s158 = smul.addr %s157, 8
      %s159 = smul.addr %s158, 8
      %s160 = scalar_lea.vmem %s3, %s159
      %p161 = scmp.lt.s32.totalorder %s14, 1
      %s162 = scalar_select %p161, %s14, 1
      %s163 = smul.addr %s162, 128
      %s164 = smul.addr %s163, 8
      %s165 = scalar_lea.vmem %s0, %s164
      %p166 = scmp.lt.s32.totalorder %s14, 1
      %s167 = scalar_select %p166, %s14, 1
      %s168 = smul.addr %s167, 8
      %s169 = smul.addr %s168, 8
      %s170 = scalar_lea.vmem %s3, %s169
      %v171 = vld [vmem:[%s1] sm:$0x3f]
      %v172 = vld [vmem:[%s165] sm:$0xff]
      %v173 = vld [vmem:[%s165 + $0x8] sm:$0xff]
      %v174 = vld [vmem:[%s165 + $0x10] sm:$0xff]
      %v175 = vld [vmem:[%s165 + $0x18] sm:$0xff]
      %v176 = vld [vmem:[%s165 + $0x20] sm:$0xff]
      %v177 = vld [vmem:[%s165 + $0x28] sm:$0xff]
      %v178 = vld [vmem:[%s165 + $0x30] sm:$0xff]
      %v179 = vld [vmem:[%s165 + $0x38] sm:$0xff]
      %v180 = vld [vmem:[%s165 + $0x40] sm:$0xff]
      %v181 = vld [vmem:[%s165 + $0x48] sm:$0xff]
      %v182 = vld [vmem:[%s165 + $0x50] sm:$0xff]
      %v183 = vld [vmem:[%s165 + $0x58] sm:$0xff]
      %v184 = vld [vmem:[%s165 + $0x60] sm:$0xff]
      %v185 = vld [vmem:[%s165 + $0x68] sm:$0xff]
      %v186 = vld [vmem:[%s165 + $0x70] sm:$0xff]
      %v187 = vld [vmem:[%s165 + $0x78] sm:$0xff]
      %v188 = vld [vmem:[%s165 + $0x80] sm:$0xff]
      %v189 = vld [vmem:[%s165 + $0x88] sm:$0xff]
      %v190 = vld [vmem:[%s165 + $0x90] sm:$0xff]
      %v191 = vld [vmem:[%s165 + $0x98] sm:$0xff]
      %v192 = vld [vmem:[%s165 + $0xa0] sm:$0xff]
      %v193 = vld [vmem:[%s165 + $0xa8] sm:$0xff]
      %v194 = vld [vmem:[%s165 + $0xb0] sm:$0xff]
      %v195 = vld [vmem:[%s165 + $0xb8] sm:$0xff]
      %v196 = vld [vmem:[%s165 + $0xc0] sm:$0x7]
      %v197 = vld [vmem:[%s165 + $0xc8] sm:$0x7]
      %v198 = vld [vmem:[%s165 + $0xd0] sm:$0x7]
      %v199 = vld [vmem:[%s165 + $0xd8] sm:$0x7]
      %v200 = vld [vmem:[%s165 + $0xe0] sm:$0x7]
      %v201 = vld [vmem:[%s165 + $0xe8] sm:$0x7]
      %v202 = vld [vmem:[%s165 + $0xf0] sm:$0x7]
      %v203 = vld [vmem:[%s165 + $0xf8] sm:$0x7]
      %vm204 = vcmask 220160
      %v206 = vsel %vm204, %v171, 0
      %vm208 = vcmask 1042432
      %v210 = vsel %vm208, %v196, 0
      %v213 = vsel %vm208, %v197, 0
      %v216 = vsel %vm208, %v198, 0
      %v219 = vsel %vm208, %v199, 0
      %v222 = vsel %vm208, %v200, 0
      %v225 = vsel %vm208, %v201, 0
      %v228 = vsel %vm208, %v202, 0
      %v231 = vsel %vm208, %v203, 0
      %233 = vmatpush.msra.mxu0 0.0
      %234 = vmatpush.msra.mxu0 0.0
      %235 = vmatpush.msra.mxu0 0.0
      %236 = vmatpush.msra.mxu0 0.0
      %237 = vmatpush.msra.mxu0 0.0
      %238 = vmatpush.msra.mxu0 0.0
      %239 = vmatpush.msra.mxu0 0.0
      %240 = vmatpush.msra.mxu0 0.0
      %241 = vmatpush.msra.mxu0 0.0
      %242 = vmatpush.msra.mxu0 0.0
      %243 = vmatpush.msra.mxu0 0.0
      %244 = vmatpush.msra.mxu0 0.0
      %245 = vmatpush.msra.mxu0 %v210
      %246 = vmatpush.msra.mxu0 %v188
      %247 = vmatpush.msra.mxu0 %v180
      %248 = vmatpush.msra.mxu0 %v172
      %249 = vmatmul.f32.gmra.mxu0 %v206
      %v250 = vpop.f32.mrf.mxu0
      %v251 = vadd.f32 0.0, %v250
      %252 = vdwg.mxu0
      %253 = vmatpush.msra.mxu0 0.0
      %254 = vmatpush.msra.mxu0 0.0
      %255 = vmatpush.msra.mxu0 0.0
      %256 = vmatpush.msra.mxu0 0.0
      %257 = vmatpush.msra.mxu0 0.0
      %258 = vmatpush.msra.mxu0 0.0
      %259 = vmatpush.msra.mxu0 0.0
      %260 = vmatpush.msra.mxu0 0.0
      %261 = vmatpush.msra.mxu0 0.0
      %262 = vmatpush.msra.mxu0 0.0
      %263 = vmatpush.msra.mxu0 0.0
      %264 = vmatpush.msra.mxu0 0.0
      %265 = vmatpush.msra.mxu0 %v213
      %266 = vmatpush.msra.mxu0 %v189
      %267 = vmatpush.msra.mxu0 %v181
      %268 = vmatpush.msra.mxu0 %v173
      %269 = vmatmul.f32.gmra.mxu0 %v206
      %v270 = vpop.f32.mrf.mxu0
      %v271 = vadd.f32 0.0, %v270
      %272 = vdwg.mxu0
      %273 = vmatpush.msra.mxu0 0.0
      %274 = vmatpush.msra.mxu0 0.0
      %275 = vmatpush.msra.mxu0 0.0
      %276 = vmatpush.msra.mxu0 0.0
      %277 = vmatpush.msra.mxu0 0.0
      %278 = vmatpush.msra.mxu0 0.0
      %279 = vmatpush.msra.mxu0 0.0
      %280 = vmatpush.msra.mxu0 0.0
      %281 = vmatpush.msra.mxu0 0.0
      %282 = vmatpush.msra.mxu0 0.0
      %283 = vmatpush.msra.mxu0 0.0
      %284 = vmatpush.msra.mxu0 0.0
      %285 = vmatpush.msra.mxu0 %v216
      %286 = vmatpush.msra.mxu0 %v190
      %287 = vmatpush.msra.mxu0 %v182
      %288 = vmatpush.msra.mxu0 %v174
      %289 = vmatmul.f32.gmra.mxu0 %v206
      %v290 = vpop.f32.mrf.mxu0
      %v291 = vadd.f32 0.0, %v290
      %292 = vdwg.mxu0
      %293 = vmatpush.msra.mxu0 0.0
      %294 = vmatpush.msra.mxu0 0.0
      %295 = vmatpush.msra.mxu0 0.0
      %296 = vmatpush.msra.mxu0 0.0
      %297 = vmatpush.msra.mxu0 0.0
      %298 = vmatpush.msra.mxu0 0.0
      %299 = vmatpush.msra.mxu0 0.0
      %300 = vmatpush.msra.mxu0 0.0
      %301 = vmatpush.msra.mxu0 0.0
      %302 = vmatpush.msra.mxu0 0.0
      %303 = vmatpush.msra.mxu0 0.0
      %304 = vmatpush.msra.mxu0 0.0
      %305 = vmatpush.msra.mxu0 %v219
      %306 = vmatpush.msra.mxu0 %v191
      %307 = vmatpush.msra.mxu0 %v183
      %308 = vmatpush.msra.mxu0 %v175
      %309 = vmatmul.f32.gmra.mxu0 %v206
      %v310 = vpop.f32.mrf.mxu0
      %v311 = vadd.f32 0.0, %v310
      %312 = vdwg.mxu0
      %313 = vmatpush.msra.mxu0 0.0
      %314 = vmatpush.msra.mxu0 0.0
      %315 = vmatpush.msra.mxu0 0.0
      %316 = vmatpush.msra.mxu0 0.0
      %317 = vmatpush.msra.mxu0 0.0
      %318 = vmatpush.msra.mxu0 0.0
      %319 = vmatpush.msra.mxu0 0.0
      %320 = vmatpush.msra.mxu0 0.0
      %321 = vmatpush.msra.mxu0 0.0
      %322 = vmatpush.msra.mxu0 0.0
      %323 = vmatpush.msra.mxu0 0.0
      %324 = vmatpush.msra.mxu0 0.0
      %325 = vmatpush.msra.mxu0 %v222
      %326 = vmatpush.msra.mxu0 %v192
      %327 = vmatpush.msra.mxu0 %v184
      %328 = vmatpush.msra.mxu0 %v176
      %329 = vmatmul.f32.gmra.mxu0 %v206
      %v330 = vpop.f32.mrf.mxu0
      %v331 = vadd.f32 0.0, %v330
      %332 = vdwg.mxu0
      %333 = vmatpush.msra.mxu0 0.0
      %334 = vmatpush.msra.mxu0 0.0
      %335 = vmatpush.msra.mxu0 0.0
      %336 = vmatpush.msra.mxu0 0.0
      %337 = vmatpush.msra.mxu0 0.0
      %338 = vmatpush.msra.mxu0 0.0
      %339 = vmatpush.msra.mxu0 0.0
      %340 = vmatpush.msra.mxu0 0.0
      %341 = vmatpush.msra.mxu0 0.0
      %342 = vmatpush.msra.mxu0 0.0
      %343 = vmatpush.msra.mxu0 0.0
      %344 = vmatpush.msra.mxu0 0.0
      %345 = vmatpush.msra.mxu0 %v225
      %346 = vmatpush.msra.mxu0 %v193
      %347 = vmatpush.msra.mxu0 %v185
      %348 = vmatpush.msra.mxu0 %v177
      %349 = vmatmul.f32.gmra.mxu0 %v206
      %v350 = vpop.f32.mrf.mxu0
      %v351 = vadd.f32 0.0, %v350
      %352 = vdwg.mxu0
      %353 = vmatpush.msra.mxu0 0.0
      %354 = vmatpush.msra.mxu0 0.0
      %355 = vmatpush.msra.mxu0 0.0
      %356 = vmatpush.msra.mxu0 0.0
      %357 = vmatpush.msra.mxu0 0.0
      %358 = vmatpush.msra.mxu0 0.0
      %359 = vmatpush.msra.mxu0 0.0
      %360 = vmatpush.msra.mxu0 0.0
      %361 = vmatpush.msra.mxu0 0.0
      %362 = vmatpush.msra.mxu0 0.0
      %363 = vmatpush.msra.mxu0 0.0
      %364 = vmatpush.msra.mxu0 0.0
      %365 = vmatpush.msra.mxu0 %v228
      %366 = vmatpush.msra.mxu0 %v194
      %367 = vmatpush.msra.mxu0 %v186
      %368 = vmatpush.msra.mxu0 %v178
      %369 = vmatmul.f32.gmra.mxu0 %v206
      %v370 = vpop.f32.mrf.mxu0
      %v371 = vadd.f32 0.0, %v370
      %372 = vdwg.mxu0
      %373 = vmatpush.msra.mxu0 0.0
      %374 = vmatpush.msra.mxu0 0.0
      %375 = vmatpush.msra.mxu0 0.0
      %376 = vmatpush.msra.mxu0 0.0
      %377 = vmatpush.msra.mxu0 0.0
      %378 = vmatpush.msra.mxu0 0.0
      %379 = vmatpush.msra.mxu0 0.0
      %380 = vmatpush.msra.mxu0 0.0
      %381 = vmatpush.msra.mxu0 0.0
      %382 = vmatpush.msra.mxu0 0.0
      %383 = vmatpush.msra.mxu0 0.0
      %384 = vmatpush.msra.mxu0 0.0
      %385 = vmatpush.msra.mxu0 %v231
      %386 = vmatpush.msra.mxu0 %v195
      %387 = vmatpush.msra.mxu0 %v187
      %388 = vmatpush.msra.mxu0 %v179
      %389 = vmatmul.f32.gmra.mxu0 %v206
      %v390 = vpop.f32.mrf.mxu0
      %v391 = vadd.f32 0.0, %v390
      %392 = vdwg.mxu0
      %s393 = scalar_lea.vmem %s165, 256
      %v394 = vld [vmem:[%s393] sm:$0xff]
      %v395 = vld [vmem:[%s393 + $0x8] sm:$0xff]
      %v396 = vld [vmem:[%s393 + $0x10] sm:$0xff]
      %v397 = vld [vmem:[%s393 + $0x18] sm:$0xff]
      %v398 = vld [vmem:[%s393 + $0x20] sm:$0xff]
      %v399 = vld [vmem:[%s393 + $0x28] sm:$0xff]
      %v400 = vld [vmem:[%s393 + $0x30] sm:$0xff]
      %v401 = vld [vmem:[%s393 + $0x38] sm:$0xff]
      %v402 = vld [vmem:[%s393 + $0x40] sm:$0xff]
      %v403 = vld [vmem:[%s393 + $0x48] sm:$0xff]
      %v404 = vld [vmem:[%s393 + $0x50] sm:$0xff]
      %v405 = vld [vmem:[%s393 + $0x58] sm:$0xff]
      %v406 = vld [vmem:[%s393 + $0x60] sm:$0xff]
      %v407 = vld [vmem:[%s393 + $0x68] sm:$0xff]
      %v408 = vld [vmem:[%s393 + $0x70] sm:$0xff]
      %v409 = vld [vmem:[%s393 + $0x78] sm:$0xff]
      %v410 = vld [vmem:[%s393 + $0x80] sm:$0xff]
      %v411 = vld [vmem:[%s393 + $0x88] sm:$0xff]
      %v412 = vld [vmem:[%s393 + $0x90] sm:$0xff]
      %v413 = vld [vmem:[%s393 + $0x98] sm:$0xff]
      %v414 = vld [vmem:[%s393 + $0xa0] sm:$0xff]
      %v415 = vld [vmem:[%s393 + $0xa8] sm:$0xff]
      %v416 = vld [vmem:[%s393 + $0xb0] sm:$0xff]
      %v417 = vld [vmem:[%s393 + $0xb8] sm:$0xff]
      %v418 = vld [vmem:[%s393 + $0xc0] sm:$0x7]
      %v419 = vld [vmem:[%s393 + $0xc8] sm:$0x7]
      %v420 = vld [vmem:[%s393 + $0xd0] sm:$0x7]
      %v421 = vld [vmem:[%s393 + $0xd8] sm:$0x7]
      %v422 = vld [vmem:[%s393 + $0xe0] sm:$0x7]
      %v423 = vld [vmem:[%s393 + $0xe8] sm:$0x7]
      %v424 = vld [vmem:[%s393 + $0xf0] sm:$0x7]
      %v425 = vld [vmem:[%s393 + $0xf8] sm:$0x7]
      %v427 = vsel %vm208, %v418, 0
      %v430 = vsel %vm208, %v419, 0
      %v433 = vsel %vm208, %v420, 0
      %v436 = vsel %vm208, %v421, 0
      %v439 = vsel %vm208, %v422, 0
      %v442 = vsel %vm208, %v423, 0
      %v445 = vsel %vm208, %v424, 0
      %v448 = vsel %vm208, %v425, 0
      %450 = vmatpush.msra.mxu0 0.0
      %451 = vmatpush.msra.mxu0 0.0
      %452 = vmatpush.msra.mxu0 0.0
      %453 = vmatpush.msra.mxu0 0.0
      %454 = vmatpush.msra.mxu0 0.0
      %455 = vmatpush.msra.mxu0 0.0
      %456 = vmatpush.msra.mxu0 0.0
      %457 = vmatpush.msra.mxu0 0.0
      %458 = vmatpush.msra.mxu0 0.0
      %459 = vmatpush.msra.mxu0 0.0
      %460 = vmatpush.msra.mxu0 0.0
      %461 = vmatpush.msra.mxu0 0.0
      %462 = vmatpush.msra.mxu0 %v427
      %463 = vmatpush.msra.mxu0 %v410
      %464 = vmatpush.msra.mxu0 %v402
      %465 = vmatpush.msra.mxu0 %v394
      %466 = vmatmul.f32.gmra.mxu0 %v206
      %v467 = vpop.f32.mrf.mxu0
      %v468 = vadd.f32 0.0, %v467
      %469 = vdwg.mxu0
      %470 = vmatpush.msra.mxu0 0.0
      %471 = vmatpush.msra.mxu0 0.0
      %472 = vmatpush.msra.mxu0 0.0
      %473 = vmatpush.msra.mxu0 0.0
      %474 = vmatpush.msra.mxu0 0.0
      %475 = vmatpush.msra.mxu0 0.0
      %476 = vmatpush.msra.mxu0 0.0
      %477 = vmatpush.msra.mxu0 0.0
      %478 = vmatpush.msra.mxu0 0.0
      %479 = vmatpush.msra.mxu0 0.0
      %480 = vmatpush.msra.mxu0 0.0
      %481 = vmatpush.msra.mxu0 0.0
      %482 = vmatpush.msra.mxu0 %v430
      %483 = vmatpush.msra.mxu0 %v411
      %484 = vmatpush.msra.mxu0 %v403
      %485 = vmatpush.msra.mxu0 %v395
      %486 = vmatmul.f32.gmra.mxu0 %v206
      %v487 = vpop.f32.mrf.mxu0
      %v488 = vadd.f32 0.0, %v487
      %489 = vdwg.mxu0
      %490 = vmatpush.msra.mxu0 0.0
      %491 = vmatpush.msra.mxu0 0.0
      %492 = vmatpush.msra.mxu0 0.0
      %493 = vmatpush.msra.mxu0 0.0
      %494 = vmatpush.msra.mxu0 0.0
      %495 = vmatpush.msra.mxu0 0.0
      %496 = vmatpush.msra.mxu0 0.0
      %497 = vmatpush.msra.mxu0 0.0
      %498 = vmatpush.msra.mxu0 0.0
      %499 = vmatpush.msra.mxu0 0.0
      %500 = vmatpush.msra.mxu0 0.0
      %501 = vmatpush.msra.mxu0 0.0
      %502 = vmatpush.msra.mxu0 %v433
      %503 = vmatpush.msra.mxu0 %v412
      %504 = vmatpush.msra.mxu0 %v404
      %505 = vmatpush.msra.mxu0 %v396
      %506 = vmatmul.f32.gmra.mxu0 %v206
      %v507 = vpop.f32.mrf.mxu0
      %v508 = vadd.f32 0.0, %v507
      %509 = vdwg.mxu0
      %510 = vmatpush.msra.mxu0 0.0
      %511 = vmatpush.msra.mxu0 0.0
      %512 = vmatpush.msra.mxu0 0.0
      %513 = vmatpush.msra.mxu0 0.0
      %514 = vmatpush.msra.mxu0 0.0
      %515 = vmatpush.msra.mxu0 0.0
      %516 = vmatpush.msra.mxu0 0.0
      %517 = vmatpush.msra.mxu0 0.0
      %518 = vmatpush.msra.mxu0 0.0
      %519 = vmatpush.msra.mxu0 0.0
      %520 = vmatpush.msra.mxu0 0.0
      %521 = vmatpush.msra.mxu0 0.0
      %522 = vmatpush.msra.mxu0 %v436
      %523 = vmatpush.msra.mxu0 %v413
      %524 = vmatpush.msra.mxu0 %v405
      %525 = vmatpush.msra.mxu0 %v397
      %526 = vmatmul.f32.gmra.mxu0 %v206
      %v527 = vpop.f32.mrf.mxu0
      %v528 = vadd.f32 0.0, %v527
      %529 = vdwg.mxu0
      %530 = vmatpush.msra.mxu0 0.0
      %531 = vmatpush.msra.mxu0 0.0
      %532 = vmatpush.msra.mxu0 0.0
      %533 = vmatpush.msra.mxu0 0.0
      %534 = vmatpush.msra.mxu0 0.0
      %535 = vmatpush.msra.mxu0 0.0
      %536 = vmatpush.msra.mxu0 0.0
      %537 = vmatpush.msra.mxu0 0.0
      %538 = vmatpush.msra.mxu0 0.0
      %539 = vmatpush.msra.mxu0 0.0
      %540 = vmatpush.msra.mxu0 0.0
      %541 = vmatpush.msra.mxu0 0.0
      %542 = vmatpush.msra.mxu0 %v439
      %543 = vmatpush.msra.mxu0 %v414
      %544 = vmatpush.msra.mxu0 %v406
      %545 = vmatpush.msra.mxu0 %v398
      %546 = vmatmul.f32.gmra.mxu0 %v206
      %v547 = vpop.f32.mrf.mxu0
      %v548 = vadd.f32 0.0, %v547
      %549 = vdwg.mxu0
      %550 = vmatpush.msra.mxu0 0.0
      %551 = vmatpush.msra.mxu0 0.0
      %552 = vmatpush.msra.mxu0 0.0
      %553 = vmatpush.msra.mxu0 0.0
      %554 = vmatpush.msra.mxu0 0.0
      %555 = vmatpush.msra.mxu0 0.0
      %556 = vmatpush.msra.mxu0 0.0
      %557 = vmatpush.msra.mxu0 0.0
      %558 = vmatpush.msra.mxu0 0.0
      %559 = vmatpush.msra.mxu0 0.0
      %560 = vmatpush.msra.mxu0 0.0
      %561 = vmatpush.msra.mxu0 0.0
      %562 = vmatpush.msra.mxu0 %v442
      %563 = vmatpush.msra.mxu0 %v415
      %564 = vmatpush.msra.mxu0 %v407
      %565 = vmatpush.msra.mxu0 %v399
      %566 = vmatmul.f32.gmra.mxu0 %v206
      %v567 = vpop.f32.mrf.mxu0
      %v568 = vadd.f32 0.0, %v567
      %569 = vdwg.mxu0
      %570 = vmatpush.msra.mxu0 0.0
      %571 = vmatpush.msra.mxu0 0.0
      %572 = vmatpush.msra.mxu0 0.0
      %573 = vmatpush.msra.mxu0 0.0
      %574 = vmatpush.msra.mxu0 0.0
      %575 = vmatpush.msra.mxu0 0.0
      %576 = vmatpush.msra.mxu0 0.0
      %577 = vmatpush.msra.mxu0 0.0
      %578 = vmatpush.msra.mxu0 0.0
      %579 = vmatpush.msra.mxu0 0.0
      %580 = vmatpush.msra.mxu0 0.0
      %581 = vmatpush.msra.mxu0 0.0
      %582 = vmatpush.msra.mxu0 %v445
      %583 = vmatpush.msra.mxu0 %v416
      %584 = vmatpush.msra.mxu0 %v408
      %585 = vmatpush.msra.mxu0 %v400
      %586 = vmatmul.f32.gmra.mxu0 %v206
      %v587 = vpop.f32.mrf.mxu0
      %v588 = vadd.f32 0.0, %v587
      %589 = vdwg.mxu0
      %590 = vmatpush.msra.mxu0 0.0
      %591 = vmatpush.msra.mxu0 0.0
      %592 = vmatpush.msra.mxu0 0.0
      %593 = vmatpush.msra.mxu0 0.0
      %594 = vmatpush.msra.mxu0 0.0
      %595 = vmatpush.msra.mxu0 0.0
      %596 = vmatpush.msra.mxu0 0.0
      %597 = vmatpush.msra.mxu0 0.0
      %598 = vmatpush.msra.mxu0 0.0
      %599 = vmatpush.msra.mxu0 0.0
      %600 = vmatpush.msra.mxu0 0.0
      %601 = vmatpush.msra.mxu0 0.0
      %602 = vmatpush.msra.mxu0 %v448
      %603 = vmatpush.msra.mxu0 %v417
      %604 = vmatpush.msra.mxu0 %v409
      %605 = vmatpush.msra.mxu0 %v401
      %606 = vmatmul.f32.gmra.mxu0 %v206
      %v607 = vpop.f32.mrf.mxu0
      %v608 = vadd.f32 0.0, %v607
      %609 = vdwg.mxu0
      %v610 = vmax.f32 %v251, %v468
      %v611 = vmax.f32 %v271, %v488
      %v612 = vmax.f32 %v291, %v508
      %v613 = vmax.f32 %v311, %v528
      %v614 = vmax.f32 %v331, %v548
      %v615 = vmax.f32 %v351, %v568
      %v616 = vmax.f32 %v371, %v588
      %v617 = vmax.f32 %v391, %v608
      %s618 = scalar_lea.vmem %s165, 512
      %v619 = vld [vmem:[%s618] sm:$0xff]
      %v620 = vld [vmem:[%s618 + $0x8] sm:$0xff]
      %v621 = vld [vmem:[%s618 + $0x10] sm:$0xff]
      %v622 = vld [vmem:[%s618 + $0x18] sm:$0xff]
      %v623 = vld [vmem:[%s618 + $0x20] sm:$0xff]
      %v624 = vld [vmem:[%s618 + $0x28] sm:$0xff]
      %v625 = vld [vmem:[%s618 + $0x30] sm:$0xff]
      %v626 = vld [vmem:[%s618 + $0x38] sm:$0xff]
      %v627 = vld [vmem:[%s618 + $0x40] sm:$0xff]
      %v628 = vld [vmem:[%s618 + $0x48] sm:$0xff]
      %v629 = vld [vmem:[%s618 + $0x50] sm:$0xff]
      %v630 = vld [vmem:[%s618 + $0x58] sm:$0xff]
      %v631 = vld [vmem:[%s618 + $0x60] sm:$0xff]
      %v632 = vld [vmem:[%s618 + $0x68] sm:$0xff]
      %v633 = vld [vmem:[%s618 + $0x70] sm:$0xff]
      %v634 = vld [vmem:[%s618 + $0x78] sm:$0xff]
      %v635 = vld [vmem:[%s618 + $0x80] sm:$0xff]
      %v636 = vld [vmem:[%s618 + $0x88] sm:$0xff]
      %v637 = vld [vmem:[%s618 + $0x90] sm:$0xff]
      %v638 = vld [vmem:[%s618 + $0x98] sm:$0xff]
      %v639 = vld [vmem:[%s618 + $0xa0] sm:$0xff]
      %v640 = vld [vmem:[%s618 + $0xa8] sm:$0xff]
      %v641 = vld [vmem:[%s618 + $0xb0] sm:$0xff]
      %v642 = vld [vmem:[%s618 + $0xb8] sm:$0xff]
      %v643 = vld [vmem:[%s618 + $0xc0] sm:$0x7]
      %v644 = vld [vmem:[%s618 + $0xc8] sm:$0x7]
      %v645 = vld [vmem:[%s618 + $0xd0] sm:$0x7]
      %v646 = vld [vmem:[%s618 + $0xd8] sm:$0x7]
      %v647 = vld [vmem:[%s618 + $0xe0] sm:$0x7]
      %v648 = vld [vmem:[%s618 + $0xe8] sm:$0x7]
      %v649 = vld [vmem:[%s618 + $0xf0] sm:$0x7]
      %v650 = vld [vmem:[%s618 + $0xf8] sm:$0x7]
      %v652 = vsel %vm208, %v643, 0
      %v655 = vsel %vm208, %v644, 0
      %v658 = vsel %vm208, %v645, 0
      %v661 = vsel %vm208, %v646, 0
      %v664 = vsel %vm208, %v647, 0
      %v667 = vsel %vm208, %v648, 0
      %v670 = vsel %vm208, %v649, 0
      %v673 = vsel %vm208, %v650, 0
      %675 = vmatpush.msra.mxu0 0.0
      %676 = vmatpush.msra.mxu0 0.0
      %677 = vmatpush.msra.mxu0 0.0
      %678 = vmatpush.msra.mxu0 0.0
      %679 = vmatpush.msra.mxu0 0.0
      %680 = vmatpush.msra.mxu0 0.0
      %681 = vmatpush.msra.mxu0 0.0
      %682 = vmatpush.msra.mxu0 0.0
      %683 = vmatpush.msra.mxu0 0.0
      %684 = vmatpush.msra.mxu0 0.0
      %685 = vmatpush.msra.mxu0 0.0
      %686 = vmatpush.msra.mxu0 0.0
      %687 = vmatpush.msra.mxu0 %v652
      %688 = vmatpush.msra.mxu0 %v635
      %689 = vmatpush.msra.mxu0 %v627
      %690 = vmatpush.msra.mxu0 %v619
      %691 = vmatmul.f32.gmra.mxu0 %v206
      %v692 = vpop.f32.mrf.mxu0
      %v693 = vadd.f32 0.0, %v692
      %694 = vdwg.mxu0
      %695 = vmatpush.msra.mxu0 0.0
      %696 = vmatpush.msra.mxu0 0.0
      %697 = vmatpush.msra.mxu0 0.0
      %698 = vmatpush.msra.mxu0 0.0
      %699 = vmatpush.msra.mxu0 0.0
      %700 = vmatpush.msra.mxu0 0.0
      %701 = vmatpush.msra.mxu0 0.0
      %702 = vmatpush.msra.mxu0 0.0
      %703 = vmatpush.msra.mxu0 0.0
      %704 = vmatpush.msra.mxu0 0.0
      %705 = vmatpush.msra.mxu0 0.0
      %706 = vmatpush.msra.mxu0 0.0
      %707 = vmatpush.msra.mxu0 %v655
      %708 = vmatpush.msra.mxu0 %v636
      %709 = vmatpush.msra.mxu0 %v628
      %710 = vmatpush.msra.mxu0 %v620
      %711 = vmatmul.f32.gmra.mxu0 %v206
      %v712 = vpop.f32.mrf.mxu0
      %v713 = vadd.f32 0.0, %v712
      %714 = vdwg.mxu0
      %715 = vmatpush.msra.mxu0 0.0
      %716 = vmatpush.msra.mxu0 0.0
      %717 = vmatpush.msra.mxu0 0.0
      %718 = vmatpush.msra.mxu0 0.0
      %719 = vmatpush.msra.mxu0 0.0
      %720 = vmatpush.msra.mxu0 0.0
      %721 = vmatpush.msra.mxu0 0.0
      %722 = vmatpush.msra.mxu0 0.0
      %723 = vmatpush.msra.mxu0 0.0
      %724 = vmatpush.msra.mxu0 0.0
      %725 = vmatpush.msra.mxu0 0.0
      %726 = vmatpush.msra.mxu0 0.0
      %727 = vmatpush.msra.mxu0 %v658
      %728 = vmatpush.msra.mxu0 %v637
      %729 = vmatpush.msra.mxu0 %v629
      %730 = vmatpush.msra.mxu0 %v621
      %731 = vmatmul.f32.gmra.mxu0 %v206
      %v732 = vpop.f32.mrf.mxu0
      %v733 = vadd.f32 0.0, %v732
      %734 = vdwg.mxu0
      %735 = vmatpush.msra.mxu0 0.0
      %736 = vmatpush.msra.mxu0 0.0
      %737 = vmatpush.msra.mxu0 0.0
      %738 = vmatpush.msra.mxu0 0.0
      %739 = vmatpush.msra.mxu0 0.0
      %740 = vmatpush.msra.mxu0 0.0
      %741 = vmatpush.msra.mxu0 0.0
      %742 = vmatpush.msra.mxu0 0.0
      %743 = vmatpush.msra.mxu0 0.0
      %744 = vmatpush.msra.mxu0 0.0
      %745 = vmatpush.msra.mxu0 0.0
      %746 = vmatpush.msra.mxu0 0.0
      %747 = vmatpush.msra.mxu0 %v661
      %748 = vmatpush.msra.mxu0 %v638
      %749 = vmatpush.msra.mxu0 %v630
      %750 = vmatpush.msra.mxu0 %v622
      %751 = vmatmul.f32.gmra.mxu0 %v206
      %v752 = vpop.f32.mrf.mxu0
      %v753 = vadd.f32 0.0, %v752
      %754 = vdwg.mxu0
      %755 = vmatpush.msra.mxu0 0.0
      %756 = vmatpush.msra.mxu0 0.0
      %757 = vmatpush.msra.mxu0 0.0
      %758 = vmatpush.msra.mxu0 0.0
      %759 = vmatpush.msra.mxu0 0.0
      %760 = vmatpush.msra.mxu0 0.0
      %761 = vmatpush.msra.mxu0 0.0
      %762 = vmatpush.msra.mxu0 0.0
      %763 = vmatpush.msra.mxu0 0.0
      %764 = vmatpush.msra.mxu0 0.0
      %765 = vmatpush.msra.mxu0 0.0
      %766 = vmatpush.msra.mxu0 0.0
      %767 = vmatpush.msra.mxu0 %v664
      %768 = vmatpush.msra.mxu0 %v639
      %769 = vmatpush.msra.mxu0 %v631
      %770 = vmatpush.msra.mxu0 %v623
      %771 = vmatmul.f32.gmra.mxu0 %v206
      %v772 = vpop.f32.mrf.mxu0
      %v773 = vadd.f32 0.0, %v772
      %774 = vdwg.mxu0
      %775 = vmatpush.msra.mxu0 0.0
      %776 = vmatpush.msra.mxu0 0.0
      %777 = vmatpush.msra.mxu0 0.0
      %778 = vmatpush.msra.mxu0 0.0
      %779 = vmatpush.msra.mxu0 0.0
      %780 = vmatpush.msra.mxu0 0.0
      %781 = vmatpush.msra.mxu0 0.0
      %782 = vmatpush.msra.mxu0 0.0
      %783 = vmatpush.msra.mxu0 0.0
      %784 = vmatpush.msra.mxu0 0.0
      %785 = vmatpush.msra.mxu0 0.0
      %786 = vmatpush.msra.mxu0 0.0
      %787 = vmatpush.msra.mxu0 %v667
      %788 = vmatpush.msra.mxu0 %v640
      %789 = vmatpush.msra.mxu0 %v632
      %790 = vmatpush.msra.mxu0 %v624
      %791 = vmatmul.f32.gmra.mxu0 %v206
      %v792 = vpop.f32.mrf.mxu0
      %v793 = vadd.f32 0.0, %v792
      %794 = vdwg.mxu0
      %795 = vmatpush.msra.mxu0 0.0
      %796 = vmatpush.msra.mxu0 0.0
      %797 = vmatpush.msra.mxu0 0.0
      %798 = vmatpush.msra.mxu0 0.0
      %799 = vmatpush.msra.mxu0 0.0
      %800 = vmatpush.msra.mxu0 0.0
      %801 = vmatpush.msra.mxu0 0.0
      %802 = vmatpush.msra.mxu0 0.0
      %803 = vmatpush.msra.mxu0 0.0
      %804 = vmatpush.msra.mxu0 0.0
      %805 = vmatpush.msra.mxu0 0.0
      %806 = vmatpush.msra.mxu0 0.0
      %807 = vmatpush.msra.mxu0 %v670
      %808 = vmatpush.msra.mxu0 %v641
      %809 = vmatpush.msra.mxu0 %v633
      %810 = vmatpush.msra.mxu0 %v625
      %811 = vmatmul.f32.gmra.mxu0 %v206
      %v812 = vpop.f32.mrf.mxu0
      %v813 = vadd.f32 0.0, %v812
      %814 = vdwg.mxu0
      %815 = vmatpush.msra.mxu0 0.0
      %816 = vmatpush.msra.mxu0 0.0
      %817 = vmatpush.msra.mxu0 0.0
      %818 = vmatpush.msra.mxu0 0.0
      %819 = vmatpush.msra.mxu0 0.0
      %820 = vmatpush.msra.mxu0 0.0
      %821 = vmatpush.msra.mxu0 0.0
      %822 = vmatpush.msra.mxu0 0.0
      %823 = vmatpush.msra.mxu0 0.0
      %824 = vmatpush.msra.mxu0 0.0
      %825 = vmatpush.msra.mxu0 0.0
      %826 = vmatpush.msra.mxu0 0.0
      %827 = vmatpush.msra.mxu0 %v673
      %828 = vmatpush.msra.mxu0 %v642
      %829 = vmatpush.msra.mxu0 %v634
      %830 = vmatpush.msra.mxu0 %v626
      %831 = vmatmul.f32.gmra.mxu0 %v206
      %v832 = vpop.f32.mrf.mxu0
      %v833 = vadd.f32 0.0, %v832
      %834 = vdwg.mxu0
      %v835 = vmax.f32 %v610, %v693
      %v836 = vmax.f32 %v611, %v713
      %v837 = vmax.f32 %v612, %v733
      %v838 = vmax.f32 %v613, %v753
      %v839 = vmax.f32 %v614, %v773
      %v840 = vmax.f32 %v615, %v793
      %v841 = vmax.f32 %v616, %v813
      %v842 = vmax.f32 %v617, %v833
      %s843 = scalar_lea.vmem %s165, 768
      %v844 = vld [vmem:[%s843] sm:$0xff]
      %v845 = vld [vmem:[%s843 + $0x8] sm:$0xff]
      %v846 = vld [vmem:[%s843 + $0x10] sm:$0xff]
      %v847 = vld [vmem:[%s843 + $0x18] sm:$0xff]
      %v848 = vld [vmem:[%s843 + $0x20] sm:$0xff]
      %v849 = vld [vmem:[%s843 + $0x28] sm:$0xff]
      %v850 = vld [vmem:[%s843 + $0x30] sm:$0xff]
      %v851 = vld [vmem:[%s843 + $0x38] sm:$0xff]
      %v852 = vld [vmem:[%s843 + $0x40] sm:$0xff]
      %v853 = vld [vmem:[%s843 + $0x48] sm:$0xff]
      %v854 = vld [vmem:[%s843 + $0x50] sm:$0xff]
      %v855 = vld [vmem:[%s843 + $0x58] sm:$0xff]
      %v856 = vld [vmem:[%s843 + $0x60] sm:$0xff]
      %v857 = vld [vmem:[%s843 + $0x68] sm:$0xff]
      %v858 = vld [vmem:[%s843 + $0x70] sm:$0xff]
      %v859 = vld [vmem:[%s843 + $0x78] sm:$0xff]
      %v860 = vld [vmem:[%s843 + $0x80] sm:$0xff]
      %v861 = vld [vmem:[%s843 + $0x88] sm:$0xff]
      %v862 = vld [vmem:[%s843 + $0x90] sm:$0xff]
      %v863 = vld [vmem:[%s843 + $0x98] sm:$0xff]
      %v864 = vld [vmem:[%s843 + $0xa0] sm:$0xff]
      %v865 = vld [vmem:[%s843 + $0xa8] sm:$0xff]
      %v866 = vld [vmem:[%s843 + $0xb0] sm:$0xff]
      %v867 = vld [vmem:[%s843 + $0xb8] sm:$0xff]
      %v868 = vld [vmem:[%s843 + $0xc0] sm:$0x7]
      %v869 = vld [vmem:[%s843 + $0xc8] sm:$0x7]
      %v870 = vld [vmem:[%s843 + $0xd0] sm:$0x7]
      %v871 = vld [vmem:[%s843 + $0xd8] sm:$0x7]
      %v872 = vld [vmem:[%s843 + $0xe0] sm:$0x7]
      %v873 = vld [vmem:[%s843 + $0xe8] sm:$0x7]
      %v874 = vld [vmem:[%s843 + $0xf0] sm:$0x7]
      %v875 = vld [vmem:[%s843 + $0xf8] sm:$0x7]
      %v877 = vsel %vm208, %v868, 0
      %v880 = vsel %vm208, %v869, 0
      %v883 = vsel %vm208, %v870, 0
      %v886 = vsel %vm208, %v871, 0
      %v889 = vsel %vm208, %v872, 0
      %v892 = vsel %vm208, %v873, 0
      %v895 = vsel %vm208, %v874, 0
      %v898 = vsel %vm208, %v875, 0
      %900 = vmatpush.msra.mxu0 0.0
      %901 = vmatpush.msra.mxu0 0.0
      %902 = vmatpush.msra.mxu0 0.0
      %903 = vmatpush.msra.mxu0 0.0
      %904 = vmatpush.msra.mxu0 0.0
      %905 = vmatpush.msra.mxu0 0.0
      %906 = vmatpush.msra.mxu0 0.0
      %907 = vmatpush.msra.mxu0 0.0
      %908 = vmatpush.msra.mxu0 0.0
      %909 = vmatpush.msra.mxu0 0.0
      %910 = vmatpush.msra.mxu0 0.0
      %911 = vmatpush.msra.mxu0 0.0
      %912 = vmatpush.msra.mxu0 %v877
      %913 = vmatpush.msra.mxu0 %v860
      %914 = vmatpush.msra.mxu0 %v852
      %915 = vmatpush.msra.mxu0 %v844
      %916 = vmatmul.f32.gmra.mxu0 %v206
      %v917 = vpop.f32.mrf.mxu0
      %v918 = vadd.f32 0.0, %v917
      %919 = vdwg.mxu0
      %920 = vmatpush.msra.mxu0 0.0
      %921 = vmatpush.msra.mxu0 0.0
      %922 = vmatpush.msra.mxu0 0.0
      %923 = vmatpush.msra.mxu0 0.0
      %924 = vmatpush.msra.mxu0 0.0
      %925 = vmatpush.msra.mxu0 0.0
      %926 = vmatpush.msra.mxu0 0.0
      %927 = vmatpush.msra.mxu0 0.0
      %928 = vmatpush.msra.mxu0 0.0
      %929 = vmatpush.msra.mxu0 0.0
      %930 = vmatpush.msra.mxu0 0.0
      %931 = vmatpush.msra.mxu0 0.0
      %932 = vmatpush.msra.mxu0 %v880
      %933 = vmatpush.msra.mxu0 %v861
      %934 = vmatpush.msra.mxu0 %v853
      %935 = vmatpush.msra.mxu0 %v845
      %936 = vmatmul.f32.gmra.mxu0 %v206
      %v937 = vpop.f32.mrf.mxu0
      %v938 = vadd.f32 0.0, %v937
      %939 = vdwg.mxu0
      %940 = vmatpush.msra.mxu0 0.0
      %941 = vmatpush.msra.mxu0 0.0
      %942 = vmatpush.msra.mxu0 0.0
      %943 = vmatpush.msra.mxu0 0.0
      %944 = vmatpush.msra.mxu0 0.0
      %945 = vmatpush.msra.mxu0 0.0
      %946 = vmatpush.msra.mxu0 0.0
      %947 = vmatpush.msra.mxu0 0.0
      %948 = vmatpush.msra.mxu0 0.0
      %949 = vmatpush.msra.mxu0 0.0
      %950 = vmatpush.msra.mxu0 0.0
      %951 = vmatpush.msra.mxu0 0.0
      %952 = vmatpush.msra.mxu0 %v883
      %953 = vmatpush.msra.mxu0 %v862
      %954 = vmatpush.msra.mxu0 %v854
      %955 = vmatpush.msra.mxu0 %v846
      %956 = vmatmul.f32.gmra.mxu0 %v206
      %v957 = vpop.f32.mrf.mxu0
      %v958 = vadd.f32 0.0, %v957
      %959 = vdwg.mxu0
      %960 = vmatpush.msra.mxu0 0.0
      %961 = vmatpush.msra.mxu0 0.0
      %962 = vmatpush.msra.mxu0 0.0
      %963 = vmatpush.msra.mxu0 0.0
      %964 = vmatpush.msra.mxu0 0.0
      %965 = vmatpush.msra.mxu0 0.0
      %966 = vmatpush.msra.mxu0 0.0
      %967 = vmatpush.msra.mxu0 0.0
      %968 = vmatpush.msra.mxu0 0.0
      %969 = vmatpush.msra.mxu0 0.0
      %970 = vmatpush.msra.mxu0 0.0
      %971 = vmatpush.msra.mxu0 0.0
      %972 = vmatpush.msra.mxu0 %v886
      %973 = vmatpush.msra.mxu0 %v863
      %974 = vmatpush.msra.mxu0 %v855
      %975 = vmatpush.msra.mxu0 %v847
      %976 = vmatmul.f32.gmra.mxu0 %v206
      %v977 = vpop.f32.mrf.mxu0
      %v978 = vadd.f32 0.0, %v977
      %979 = vdwg.mxu0
      %980 = vmatpush.msra.mxu0 0.0
      %981 = vmatpush.msra.mxu0 0.0
      %982 = vmatpush.msra.mxu0 0.0
      %983 = vmatpush.msra.mxu0 0.0
      %984 = vmatpush.msra.mxu0 0.0
      %985 = vmatpush.msra.mxu0 0.0
      %986 = vmatpush.msra.mxu0 0.0
      %987 = vmatpush.msra.mxu0 0.0
      %988 = vmatpush.msra.mxu0 0.0
      %989 = vmatpush.msra.mxu0 0.0
      %990 = vmatpush.msra.mxu0 0.0
      %991 = vmatpush.msra.mxu0 0.0
      %992 = vmatpush.msra.mxu0 %v889
      %993 = vmatpush.msra.mxu0 %v864
      %994 = vmatpush.msra.mxu0 %v856
      %995 = vmatpush.msra.mxu0 %v848
      %996 = vmatmul.f32.gmra.mxu0 %v206
      %v997 = vpop.f32.mrf.mxu0
      %v998 = vadd.f32 0.0, %v997
      %999 = vdwg.mxu0
      %1000 = vmatpush.msra.mxu0 0.0
      %1001 = vmatpush.msra.mxu0 0.0
      %1002 = vmatpush.msra.mxu0 0.0
      %1003 = vmatpush.msra.mxu0 0.0
      %1004 = vmatpush.msra.mxu0 0.0
      %1005 = vmatpush.msra.mxu0 0.0
      %1006 = vmatpush.msra.mxu0 0.0
      %1007 = vmatpush.msra.mxu0 0.0
      %1008 = vmatpush.msra.mxu0 0.0
      %1009 = vmatpush.msra.mxu0 0.0
      %1010 = vmatpush.msra.mxu0 0.0
      %1011 = vmatpush.msra.mxu0 0.0
      %1012 = vmatpush.msra.mxu0 %v892
      %1013 = vmatpush.msra.mxu0 %v865
      %1014 = vmatpush.msra.mxu0 %v857
      %1015 = vmatpush.msra.mxu0 %v849
      %1016 = vmatmul.f32.gmra.mxu0 %v206
      %v1017 = vpop.f32.mrf.mxu0
      %v1018 = vadd.f32 0.0, %v1017
      %1019 = vdwg.mxu0
      %1020 = vmatpush.msra.mxu0 0.0
      %1021 = vmatpush.msra.mxu0 0.0
      %1022 = vmatpush.msra.mxu0 0.0
      %1023 = vmatpush.msra.mxu0 0.0
      %1024 = vmatpush.msra.mxu0 0.0
      %1025 = vmatpush.msra.mxu0 0.0
      %1026 = vmatpush.msra.mxu0 0.0
      %1027 = vmatpush.msra.mxu0 0.0
      %1028 = vmatpush.msra.mxu0 0.0
      %1029 = vmatpush.msra.mxu0 0.0
      %1030 = vmatpush.msra.mxu0 0.0
      %1031 = vmatpush.msra.mxu0 0.0
      %1032 = vmatpush.msra.mxu0 %v895
      %1033 = vmatpush.msra.mxu0 %v866
      %1034 = vmatpush.msra.mxu0 %v858
      %1035 = vmatpush.msra.mxu0 %v850
      %1036 = vmatmul.f32.gmra.mxu0 %v206
      %v1037 = vpop.f32.mrf.mxu0
      %v1038 = vadd.f32 0.0, %v1037
      %1039 = vdwg.mxu0
      %1040 = vmatpush.msra.mxu0 0.0
      %1041 = vmatpush.msra.mxu0 0.0
      %1042 = vmatpush.msra.mxu0 0.0
      %1043 = vmatpush.msra.mxu0 0.0
      %1044 = vmatpush.msra.mxu0 0.0
      %1045 = vmatpush.msra.mxu0 0.0
      %1046 = vmatpush.msra.mxu0 0.0
      %1047 = vmatpush.msra.mxu0 0.0
      %1048 = vmatpush.msra.mxu0 0.0
      %1049 = vmatpush.msra.mxu0 0.0
      %1050 = vmatpush.msra.mxu0 0.0
      %1051 = vmatpush.msra.mxu0 0.0
      %1052 = vmatpush.msra.mxu0 %v898
      %1053 = vmatpush.msra.mxu0 %v867
      %1054 = vmatpush.msra.mxu0 %v859
      %1055 = vmatpush.msra.mxu0 %v851
      %1056 = vmatmul.f32.gmra.mxu0 %v206
      %v1057 = vpop.f32.mrf.mxu0
      %v1058 = vadd.f32 0.0, %v1057
      %1059 = vdwg.mxu0
      %v1060 = vmax.f32 %v835, %v918
      %v1061 = vmax.f32 %v836, %v938
      %v1062 = vmax.f32 %v837, %v958
      %v1063 = vmax.f32 %v838, %v978
      %v1064 = vmax.f32 %v839, %v998
      %v1065 = vmax.f32 %v840, %v1018
      %v1066 = vmax.f32 %v841, %v1038
      %v1067 = vmax.f32 %v842, %v1058
      %v1068 = vld [vmem:[%s2] sm:$0x3f]
      %1070 = vset.pattern.permute.xlu0 0
      %1071 = vperm.xlu0 %1070, %v1068
      %v1072 = vpop.permute.xlu0 %1071
      %v1074 = vadd.f32 %v1060, %v1072
      %v1075 = vadd.f32 %v1061, %v1072
      %v1076 = vadd.f32 %v1062, %v1072
      %v1077 = vadd.f32 %v1063, %v1072
      %v1078 = vadd.f32 %v1064, %v1072
      %v1079 = vadd.f32 %v1065, %v1072
      %v1080 = vadd.f32 %v1066, %v1072
      %v1081 = vadd.f32 %v1067, %v1072
      %v1082 = vmax.f32 %v1074, 0.0
      %v1083 = vmax.f32 %v1075, 0.0
      %v1084 = vmax.f32 %v1076, 0.0
      %v1085 = vmax.f32 %v1077, 0.0
      %v1086 = vmax.f32 %v1078, 0.0
      %v1087 = vmax.f32 %v1079, 0.0
      %v1088 = vmax.f32 %v1080, 0.0
      %v1089 = vmax.f32 %v1081, 0.0
      %1090 = vst [vmem:[%s170] sm:$0x3f] %v1082
      %1091 = vst [vmem:[%s170 + $0x8] sm:$0x3f] %v1083
      %1092 = vst [vmem:[%s170 + $0x10] sm:$0x3f] %v1084
      %1093 = vst [vmem:[%s170 + $0x18] sm:$0x3f] %v1085
      %1094 = vst [vmem:[%s170 + $0x20] sm:$0x3f] %v1086
      %1095 = vst [vmem:[%s170 + $0x28] sm:$0x3f] %v1087
      %1096 = vst [vmem:[%s170 + $0x30] sm:$0x3f] %v1088
      %vm1097 = vcmask 29696
      %1098 = vst.msk [vmem:[%s170 + $0x38] sm:$0x3f] %vm1097, %v1089
      %p1099 = scmp.lt.s32.totalorder %s14, 1
      %s1100 = scalar_select %p1099, %s14, 1
      %s1101 = smul.addr %s1100, 8
      %s1102 = smul.addr %s1101, 8
      %s1103 = scalar_lea.vmem %s3, %s1102
      // Predicated region
      $region33: #{simple_net_forward.3} parent=31 // pred_check
        %p1104 = pneg %p100
      $region34: #{simple_net_forward.3} parent=31 // pred_check_branch
        %1106 = sbr.rel (%p1104) target = $region36
      $region35: #{simple_net_forward.3} parent=31 // pred_region
        _
      $region36: #{simple_net_forward.3} parent=31 // pred_fallthru
        _
    $region32: #{simple_net_forward.3} parent=5 // pred_fallthru
      _
    %p1107 = scmp.le.s32.totalorder 2, %s9
    // Predicated region
    $region37: #{simple_net_forward.3} parent=5 // pred_check
      %p1108 = pneg %p1107
    $region38: #{simple_net_forward.3} parent=5 // pred_check_branch
      %1110 = sbr.rel (%p1108) target = $region40
    $region39: #{simple_net_forward.3} parent=5 // pred_region
      %s1111 = ssub.s32 %s9, 2
      // Predicated region
      $region41: #{simple_net_forward.3} parent=39 // pred_check
        %p1112 = pneg %p106
      $region42: #{simple_net_forward.3} parent=39 // pred_check_branch
        %1114 = sbr.rel (%p1112) target = $region44
      $region43: #{simple_net_forward.3} parent=39 // pred_region
        %p1115 = scmp.lt.s32.totalorder %s15, 1
        %s1116 = scalar_select %p1115, %s15, 1
        %s1117 = smul.addr %s1116, 8
        %s1118 = smul.addr %s1117, 8
        %s1119 = scalar_lea.vmem %s3, %s1118
      $region44: #{simple_net_forward.3} parent=39 // pred_fallthru
        _
    $region40: #{simple_net_forward.3} parent=5 // pred_fallthru
      _
  $region6: #{simple_net_forward.3} parent=0 // loop_footer
    %s13 = sadd.s32 1, %s9
  $region7: #{simple_net_forward.3} parent=0 // loop_footer_branch
    %8 = sbr.rel target = $region3
  $region8: #{simple_net_forward.3} parent=0 // loop_exit
    _

// kernel: simple_net_forward.4
$region0: #{simple_net_forward.4}
  #allocation0 [shape = 'u32[]', space=smem, size = 0x4, offset = 0x4, fixed_abs, tag = 'smem constant byte address 0x4 - core index']
  #allocation1 [shape = 'u32[72,128]{1,0:T(1,128)}', space=vmem, size = 0x9000, scoped, tag = 'internal scratch']
  %s0 = inlined_call_operand.vmem [shape: f32[2,4,54,196], index: 0, kind: input, shape index: {}]
  %s1 = inlined_call_operand.vmem [shape: f32[12,54], index: 1, kind: input, shape index: {}]
  %s2 = inlined_call_operand.vmem [shape: f32[12,1], index: 2, kind: input, shape index: {}]
  %s3 = inlined_call_operand.vmem [shape: f32[2,12,196], index: 3, kind: output, shape index: {}]
  %s4 = sld [smem:[#allocation0]]
  $region45: #{simple_net_forward.4} parent=0
    _
  %s6 = ssub.s32 1, %s4
  %s7 = scalar_select 0, %s6, %s4
  loop: start=0, step=1, limit=4
  $region2: #{simple_net_forward.4} parent=0 // loop_pre_header
    _
  $region3: #{simple_net_forward.4} parent=0 // loop_header
    %s9 = sphi 0, %s13
    %p10 = scmp.ge.s32.totalorder %s9, 4
    %s19 = sphi 0, %s21
    %s22 = sphi 0, %s19
    %s23 = sphi 0, %s22
    %s39 = sphi 0, %s23
    %s43 = sphi 0, %s43
    %s45 = sphi 0, %s43
    %s46 = sphi 0, %s45
    %s60 = sphi 0, %s46
    %s64 = sphi 0, %s64
    %s66 = sphi 0, %s64
    %s67 = sphi 0, %s66
    %s81 = sphi 0, %s67
    %s87 = sphi 0, %s89
    %s90 = sphi 0, %s87
    %s91 = sphi 0, %s90
    %s107 = sphi 0, %s91
  $region4: #{simple_net_forward.4} parent=0 // loop_header_branch
    %12 = sbr.rel (%p10) target = $region8
  $region5: #{simple_net_forward.4} parent=0 // loop_body
    %s14 = ssub.s32 %s9, 1
    %s15 = ssub.s32 %s9, 2
    %s16 = sadd.s32 %s9, 1
    %s17 = ssub.s32 %s9, %s16
    %p18 = scmp.eq.s32.totalorder %s17, 0
    %s20 = sadd.s32 %s19, 1
    %s21 = scalar_select %p18, %s19, %s20
    %p24 = pneg %p18
    %p25 = scmp.eq.s32.totalorder %s9, 1
    %p26 = por %p24, %p25
    %p27 = scmp.ne.s32.totalorder %s19, %s22
    %p28 = scmp.eq.s32.totalorder %s9, 0
    %p29 = por %p27, %p28
    %p30 = scmp.ne.s32.totalorder %s19, %s22
    %p31 = scmp.eq.s32.totalorder %s14, 1
    %p32 = por %p30, %p31
    %p33 = scmp.ne.s32.totalorder %s22, %s23
    %p34 = scmp.eq.s32.totalorder %s14, 0
    %p35 = por %p33, %p34
    %p36 = scmp.ne.s32.totalorder %s22, %s23
    %p37 = scmp.eq.s32.totalorder %s15, 1
    %p38 = por %p36, %p37
    %p40 = scmp.ne.s32.totalorder %s23, %s39
    %p41 = scmp.eq.s32.totalorder %s15, 0
    %p42 = por %p40, %p41
    %s44 = sadd.s32 %s43, 1
    %p47 = scmp.eq.s32.totalorder %s9, 1
    %p48 = scmp.ne.s32.totalorder %s43, %s45
    %p49 = scmp.eq.s32.totalorder %s9, 0
    %p50 = por %p48, %p49
    %p51 = scmp.ne.s32.totalorder %s43, %s45
    %p52 = scmp.eq.s32.totalorder %s14, 1
    %p53 = por %p51, %p52
    %p54 = scmp.ne.s32.totalorder %s45, %s46
    %p55 = scmp.eq.s32.totalorder %s14, 0
    %p56 = por %p54, %p55
    %p57 = scmp.ne.s32.totalorder %s45, %s46
    %p58 = scmp.eq.s32.totalorder %s15, 1
    %p59 = por %p57, %p58
    %p61 = scmp.ne.s32.totalorder %s46, %s60
    %p62 = scmp.eq.s32.totalorder %s15, 0
    %p63 = por %p61, %p62
    %s65 = sadd.s32 %s64, 1
    %p68 = scmp.eq.s32.totalorder %s9, 1
    %p69 = scmp.ne.s32.totalorder %s64, %s66
    %p70 = scmp.eq.s32.totalorder %s9, 0
    %p71 = por %p69, %p70
    %p72 = scmp.ne.s32.totalorder %s64, %s66
    %p73 = scmp.eq.s32.totalorder %s14, 1
    %p74 = por %p72, %p73
    %p75 = scmp.ne.s32.totalorder %s66, %s67
    %p76 = scmp.eq.s32.totalorder %s14, 0
    %p77 = por %p75, %p76
    %p78 = scmp.ne.s32.totalorder %s66, %s67
    %p79 = scmp.eq.s32.totalorder %s15, 1
    %p80 = por %p78, %p79
    %p82 = scmp.ne.s32.totalorder %s67, %s81
    %p83 = scmp.eq.s32.totalorder %s15, 0
    %p84 = por %p82, %p83
    %s85 = ssub.s32 %s9, %s16
    %p86 = scmp.eq.s32.totalorder %s85, 0
    %s88 = sadd.s32 %s87, 1
    %s89 = scalar_select %p86, %s87, %s88
    %p92 = pneg %p86
    %p93 = scmp.eq.s32.totalorder %s9, 1
    %p94 = por %p92, %p93
    %p95 = scmp.ne.s32.totalorder %s87, %s90
    %p96 = scmp.eq.s32.totalorder %s9, 0
    %p97 = por %p95, %p96
    %p98 = scmp.ne.s32.totalorder %s87, %s90
    %p99 = scmp.eq.s32.totalorder %s14, 1
    %p100 = por %p98, %p99
    %p101 = scmp.ne.s32.totalorder %s90, %s91
    %p102 = scmp.eq.s32.totalorder %s14, 0
    %p103 = por %p101, %p102
    %p104 = scmp.ne.s32.totalorder %s90, %s91
    %p105 = scmp.eq.s32.totalorder %s15, 1
    %p106 = por %p104, %p105
    %p108 = scmp.ne.s32.totalorder %s91, %s107
    %p109 = scmp.eq.s32.totalorder %s15, 0
    %p110 = por %p108, %p109
    %p111 = scmp.le.s32.totalorder 1, %s9
    %p112 = scmp.lt.s32.totalorder %s9, 3
    %p113 = pnand %p111, %p112
    %p114 = pneg %p113
    // Predicated region
    $region9: #{simple_net_forward.4} parent=5 // pred_check
      _
    $region10: #{simple_net_forward.4} parent=5 // pred_check_branch
      %116 = sbr.rel (%p113) target = $region12
    $region11: #{simple_net_forward.4} parent=5 // pred_region
      %s117 = ssub.s32 %s9, 1
      // Predicated region
      $region13: #{simple_net_forward.4} parent=11 // pred_check
        %p118 = pneg %p56
      $region14: #{simple_net_forward.4} parent=11 // pred_check_branch
        %120 = sbr.rel (%p118) target = $region16
      $region15: #{simple_net_forward.4} parent=11 // pred_region
        _
      $region16: #{simple_net_forward.4} parent=11 // pred_fallthru
        _
      // Predicated region
      $region17: #{simple_net_forward.4} parent=11 // pred_check
        %p121 = pneg %p77
      $region18: #{simple_net_forward.4} parent=11 // pred_check_branch
        %123 = sbr.rel (%p121) target = $region20
      $region19: #{simple_net_forward.4} parent=11 // pred_region
        _
      $region20: #{simple_net_forward.4} parent=11 // pred_fallthru
        _
    $region12: #{simple_net_forward.4} parent=5 // pred_fallthru
      _
    %p124 = scmp.lt.s32.totalorder %s9, 2
    // Predicated region
    $region21: #{simple_net_forward.4} parent=5 // pred_check
      %p125 = pneg %p124
    $region22: #{simple_net_forward.4} parent=5 // pred_check_branch
      %127 = sbr.rel (%p125) target = $region24
    $region23: #{simple_net_forward.4} parent=5 // pred_region
      // Predicated region
      $region25: #{simple_net_forward.4} parent=23 // pred_check
        %p128 = pneg %p29
      $region26: #{simple_net_forward.4} parent=23 // pred_check_branch
        %130 = sbr.rel (%p128) target = $region28
      $region27: #{simple_net_forward.4} parent=23 // pred_region
        %p131 = scmp.lt.s32.totalorder %s9, 1
        %s132 = scalar_select %p131, %s9, 1
        %s133 = smul.addr %s132, 56
        %s134 = smul.addr %s133, 8
        %s135 = scalar_lea.vmem %s0, %s134
      $region28: #{simple_net_forward.4} parent=23 // pred_fallthru
        _
    $region24: #{simple_net_forward.4} parent=5 // pred_fallthru
      _
    %p136 = scmp.le.s32.totalorder 1, %s9
    %p137 = scmp.lt.s32.totalorder %s9, 3
    %p138 = pnand %p136, %p137
    %p139 = pneg %p138
    // Predicated region
    $region29: #{simple_net_forward.4} parent=5 // pred_check
      _
    $region30: #{simple_net_forward.4} parent=5 // pred_check_branch
      %141 = sbr.rel (%p138) target = $region32
    $region31: #{simple_net_forward.4} parent=5 // pred_region
      %s142 = ssub.s32 %s9, 1
      %p143 = scmp.lt.s32.totalorder %s14, 1
      %s144 = scalar_select %p143, %s14, 1
      %s145 = smul.addr %s144, 56
      %s146 = smul.addr %s145, 8
      %s147 = scalar_lea.vmem %s0, %s146
      %p148 = pneg %p35
      %p149 = pneg %p32
      %p150 = pneg %p56
      %p151 = pneg %p53
      %p152 = pneg %p77
      %p153 = pneg %p74
      %p154 = pneg %p103
      %p155 = pneg %p100
      %p156 = scmp.lt.s32.totalorder %s14, 1
      %s157 = scalar_select %p156, %s14, 1
      %s158 = smul.addr %s157, 4
      %s159 = smul.addr %s158, 8
      %s160 = scalar_lea.vmem %s3, %s159
      %p161 = scmp.lt.s32.totalorder %s14, 1
      %s162 = scalar_select %p161, %s14, 1
      %s163 = smul.addr %s162, 56
      %s164 = smul.addr %s163, 8
      %s165 = scalar_lea.vmem %s0, %s164
      %p166 = scmp.lt.s32.totalorder %s14, 1
      %s167 = scalar_select %p166, %s14, 1
      %s168 = smul.addr %s167, 4
      %s169 = smul.addr %s168, 8
      %s170 = scalar_lea.vmem %s3, %s169
      %v171 = vld [vmem:[%s1] sm:$0xff]
      %v172 = vld [vmem:[%s1 + $0x8] sm:$0xf]
      %v173 = vld [vmem:[%s165] sm:$0xff]
      %v174 = vld [vmem:[%s165 + $0x8] sm:$0xff]
      %v175 = vld [vmem:[%s165 + $0x10] sm:$0xff]
      %v176 = vld [vmem:[%s165 + $0x18] sm:$0xff]
      %v177 = vld [vmem:[%s165 + $0x20] sm:$0xff]
      %v178 = vld [vmem:[%s165 + $0x28] sm:$0xff]
      %v179 = vld [vmem:[%s165 + $0x30] sm:$0xff]
      %v180 = vld [vmem:[%s165 + $0x38] sm:$0xff]
      %v181 = vld [vmem:[%s165 + $0x40] sm:$0xff]
      %v182 = vld [vmem:[%s165 + $0x48] sm:$0xff]
      %v183 = vld [vmem:[%s165 + $0x50] sm:$0xff]
      %v184 = vld [vmem:[%s165 + $0x58] sm:$0xff]
      %v185 = vld [vmem:[%s165 + $0x60] sm:$0x3f]
      %v186 = vld [vmem:[%s165 + $0x68] sm:$0x3f]
      %vm187 = vcmask 441344
      %v189 = vsel %vm187, %v171, 0
      %v192 = vsel %vm187, %v172, 0
      %vm194 = vcmask 1045504
      %v196 = vsel %vm194, %v185, 0
      %v199 = vsel %vm194, %v186, 0
      %201 = vmatpush.msra.mxu0 0.0
      %202 = vmatpush.msra.mxu0 0.0
      %203 = vmatpush.msra.mxu0 0.0
      %204 = vmatpush.msra.mxu0 0.0
      %205 = vmatpush.msra.mxu0 0.0
      %206 = vmatpush.msra.mxu0 0.0
      %207 = vmatpush.msra.mxu0 0.0
      %208 = vmatpush.msra.mxu0 0.0
      %209 = vmatpush.msra.mxu0 0.0
      %210 = vmatpush.msra.mxu0 %v196
      %211 = vmatpush.msra.mxu0 %v183
      %212 = vmatpush.msra.mxu0 %v181
      %213 = vmatpush.msra.mxu0 %v179
      %214 = vmatpush.msra.mxu0 %v177
      %215 = vmatpush.msra.mxu0 %v175
      %216 = vmatpush.msra.mxu0 %v173
      %217 = vmatmul.f32.gmra.mxu0 %v189
      %v218 = vpop.f32.mrf.mxu0
      %v219 = vadd.f32 0.0, %v218
      %220 = vmatmul.f32.gmra.mxu0 %v192
      %v221 = vpop.f32.mrf.mxu0
      %v222 = vadd.f32 0.0, %v221
      %223 = vdwg.mxu0
      %224 = vmatpush.msra.mxu0 0.0
      %225 = vmatpush.msra.mxu0 0.0
      %226 = vmatpush.msra.mxu0 0.0
      %227 = vmatpush.msra.mxu0 0.0
      %228 = vmatpush.msra.mxu0 0.0
      %229 = vmatpush.msra.mxu0 0.0
      %230 = vmatpush.msra.mxu0 0.0
      %231 = vmatpush.msra.mxu0 0.0
      %232 = vmatpush.msra.mxu0 0.0
      %233 = vmatpush.msra.mxu0 %v199
      %234 = vmatpush.msra.mxu0 %v184
      %235 = vmatpush.msra.mxu0 %v182
      %236 = vmatpush.msra.mxu0 %v180
      %237 = vmatpush.msra.mxu0 %v178
      %238 = vmatpush.msra.mxu0 %v176
      %239 = vmatpush.msra.mxu0 %v174
      %240 = vmatmul.f32.gmra.mxu0 %v189
      %v241 = vpop.f32.mrf.mxu0
      %v242 = vadd.f32 0.0, %v241
      %243 = vmatmul.f32.gmra.mxu0 %v192
      %v244 = vpop.f32.mrf.mxu0
      %v245 = vadd.f32 0.0, %v244
      %246 = vdwg.mxu0
      %s247 = scalar_lea.vmem %s165, 112
      %v248 = vld [vmem:[%s247] sm:$0xff]
      %v249 = vld [vmem:[%s247 + $0x8] sm:$0xff]
      %v250 = vld [vmem:[%s247 + $0x10] sm:$0xff]
      %v251 = vld [vmem:[%s247 + $0x18] sm:$0xff]
      %v252 = vld [vmem:[%s247 + $0x20] sm:$0xff]
      %v253 = vld [vmem:[%s247 + $0x28] sm:$0xff]
      %v254 = vld [vmem:[%s247 + $0x30] sm:$0xff]
      %v255 = vld [vmem:[%s247 + $0x38] sm:$0xff]
      %v256 = vld [vmem:[%s247 + $0x40] sm:$0xff]
      %v257 = vld [vmem:[%s247 + $0x48] sm:$0xff]
      %v258 = vld [vmem:[%s247 + $0x50] sm:$0xff]
      %v259 = vld [vmem:[%s247 + $0x58] sm:$0xff]
      %v260 = vld [vmem:[%s247 + $0x60] sm:$0x3f]
      %v261 = vld [vmem:[%s247 + $0x68] sm:$0x3f]
      %v263 = vsel %vm194, %v260, 0
      %v266 = vsel %vm194, %v261, 0
      %268 = vmatpush.msra.mxu0 0.0
      %269 = vmatpush.msra.mxu0 0.0
      %270 = vmatpush.msra.mxu0 0.0
      %271 = vmatpush.msra.mxu0 0.0
      %272 = vmatpush.msra.mxu0 0.0
      %273 = vmatpush.msra.mxu0 0.0
      %274 = vmatpush.msra.mxu0 0.0
      %275 = vmatpush.msra.mxu0 0.0
      %276 = vmatpush.msra.mxu0 0.0
      %277 = vmatpush.msra.mxu0 %v263
      %278 = vmatpush.msra.mxu0 %v258
      %279 = vmatpush.msra.mxu0 %v256
      %280 = vmatpush.msra.mxu0 %v254
      %281 = vmatpush.msra.mxu0 %v252
      %282 = vmatpush.msra.mxu0 %v250
      %283 = vmatpush.msra.mxu0 %v248
      %284 = vmatmul.f32.gmra.mxu0 %v189
      %v285 = vpop.f32.mrf.mxu0
      %v286 = vadd.f32 0.0, %v285
      %287 = vmatmul.f32.gmra.mxu0 %v192
      %v288 = vpop.f32.mrf.mxu0
      %v289 = vadd.f32 0.0, %v288
      %290 = vdwg.mxu0
      %291 = vmatpush.msra.mxu0 0.0
      %292 = vmatpush.msra.mxu0 0.0
      %293 = vmatpush.msra.mxu0 0.0
      %294 = vmatpush.msra.mxu0 0.0
      %295 = vmatpush.msra.mxu0 0.0
      %296 = vmatpush.msra.mxu0 0.0
      %297 = vmatpush.msra.mxu0 0.0
      %298 = vmatpush.msra.mxu0 0.0
      %299 = vmatpush.msra.mxu0 0.0
      %300 = vmatpush.msra.mxu0 %v266
      %301 = vmatpush.msra.mxu0 %v259
      %302 = vmatpush.msra.mxu0 %v257
      %303 = vmatpush.msra.mxu0 %v255
      %304 = vmatpush.msra.mxu0 %v253
      %305 = vmatpush.msra.mxu0 %v251
      %306 = vmatpush.msra.mxu0 %v249
      %307 = vmatmul.f32.gmra.mxu0 %v189
      %v308 = vpop.f32.mrf.mxu0
      %v309 = vadd.f32 0.0, %v308
      %310 = vmatmul.f32.gmra.mxu0 %v192
      %v311 = vpop.f32.mrf.mxu0
      %v312 = vadd.f32 0.0, %v311
      %313 = vdwg.mxu0
      %v314 = vmax.f32 %v219, %v286
      %v315 = vmax.f32 %v242, %v309
      %v316 = vmax.f32 %v222, %v289
      %v317 = vmax.f32 %v245, %v312
      %s318 = scalar_lea.vmem %s165, 224
      %v319 = vld [vmem:[%s318] sm:$0xff]
      %v320 = vld [vmem:[%s318 + $0x8] sm:$0xff]
      %v321 = vld [vmem:[%s318 + $0x10] sm:$0xff]
      %v322 = vld [vmem:[%s318 + $0x18] sm:$0xff]
      %v323 = vld [vmem:[%s318 + $0x20] sm:$0xff]
      %v324 = vld [vmem:[%s318 + $0x28] sm:$0xff]
      %v325 = vld [vmem:[%s318 + $0x30] sm:$0xff]
      %v326 = vld [vmem:[%s318 + $0x38] sm:$0xff]
      %v327 = vld [vmem:[%s318 + $0x40] sm:$0xff]
      %v328 = vld [vmem:[%s318 + $0x48] sm:$0xff]
      %v329 = vld [vmem:[%s318 + $0x50] sm:$0xff]
      %v330 = vld [vmem:[%s318 + $0x58] sm:$0xff]
      %v331 = vld [vmem:[%s318 + $0x60] sm:$0x3f]
      %v332 = vld [vmem:[%s318 + $0x68] sm:$0x3f]
      %v334 = vsel %vm194, %v331, 0
      %v337 = vsel %vm194, %v332, 0
      %339 = vmatpush.msra.mxu0 0.0
      %340 = vmatpush.msra.mxu0 0.0
      %341 = vmatpush.msra.mxu0 0.0
      %342 = vmatpush.msra.mxu0 0.0
      %343 = vmatpush.msra.mxu0 0.0
      %344 = vmatpush.msra.mxu0 0.0
      %345 = vmatpush.msra.mxu0 0.0
      %346 = vmatpush.msra.mxu0 0.0
      %347 = vmatpush.msra.mxu0 0.0
      %348 = vmatpush.msra.mxu0 %v334
      %349 = vmatpush.msra.mxu0 %v329
      %350 = vmatpush.msra.mxu0 %v327
      %351 = vmatpush.msra.mxu0 %v325
      %352 = vmatpush.msra.mxu0 %v323
      %353 = vmatpush.msra.mxu0 %v321
      %354 = vmatpush.msra.mxu0 %v319
      %355 = vmatmul.f32.gmra.mxu0 %v189
      %v356 = vpop.f32.mrf.mxu0
      %v357 = vadd.f32 0.0, %v356
      %358 = vmatmul.f32.gmra.mxu0 %v192
      %v359 = vpop.f32.mrf.mxu0
      %v360 = vadd.f32 0.0, %v359
      %361 = vdwg.mxu0
      %362 = vmatpush.msra.mxu0 0.0
      %363 = vmatpush.msra.mxu0 0.0
      %364 = vmatpush.msra.mxu0 0.0
      %365 = vmatpush.msra.mxu0 0.0
      %366 = vmatpush.msra.mxu0 0.0
      %367 = vmatpush.msra.mxu0 0.0
      %368 = vmatpush.msra.mxu0 0.0
      %369 = vmatpush.msra.mxu0 0.0
      %370 = vmatpush.msra.mxu0 0.0
      %371 = vmatpush.msra.mxu0 %v337
      %372 = vmatpush.msra.mxu0 %v330
      %373 = vmatpush.msra.mxu0 %v328
      %374 = vmatpush.msra.mxu0 %v326
      %375 = vmatpush.msra.mxu0 %v324
      %376 = vmatpush.msra.mxu0 %v322
      %377 = vmatpush.msra.mxu0 %v320
      %378 = vmatmul.f32.gmra.mxu0 %v189
      %v379 = vpop.f32.mrf.mxu0
      %v380 = vadd.f32 0.0, %v379
      %381 = vmatmul.f32.gmra.mxu0 %v192
      %v382 = vpop.f32.mrf.mxu0
      %v383 = vadd.f32 0.0, %v382
      %384 = vdwg.mxu0
      %v385 = vmax.f32 %v314, %v357
      %v386 = vmax.f32 %v315, %v380
      %v387 = vmax.f32 %v316, %v360
      %v388 = vmax.f32 %v317, %v383
      %s389 = scalar_lea.vmem %s165, 336
      %v390 = vld [vmem:[%s389] sm:$0xff]
      %v391 = vld [vmem:[%s389 + $0x8] sm:$0xff]
      %v392 = vld [vmem:[%s389 + $0x10] sm:$0xff]
      %v393 = vld [vmem:[%s389 + $0x18] sm:$0xff]
      %v394 = vld [vmem:[%s389 + $0x20] sm:$0xff]
      %v395 = vld [vmem:[%s389 + $0x28] sm:$0xff]
      %v396 = vld [vmem:[%s389 + $0x30] sm:$0xff]
      %v397 = vld [vmem:[%s389 + $0x38] sm:$0xff]
      %v398 = vld [vmem:[%s389 + $0x40] sm:$0xff]
      %v399 = vld [vmem:[%s389 + $0x48] sm:$0xff]
      %v400 = vld [vmem:[%s389 + $0x50] sm:$0xff]
      %v401 = vld [vmem:[%s389 + $0x58] sm:$0xff]
      %v402 = vld [vmem:[%s389 + $0x60] sm:$0x3f]
      %v403 = vld [vmem:[%s389 + $0x68] sm:$0x3f]
      %v405 = vsel %vm194, %v402, 0
      %v408 = vsel %vm194, %v403, 0
      %410 = vmatpush.msra.mxu0 0.0
      %411 = vmatpush.msra.mxu0 0.0
      %412 = vmatpush.msra.mxu0 0.0
      %413 = vmatpush.msra.mxu0 0.0
      %414 = vmatpush.msra.mxu0 0.0
      %415 = vmatpush.msra.mxu0 0.0
      %416 = vmatpush.msra.mxu0 0.0
      %417 = vmatpush.msra.mxu0 0.0
      %418 = vmatpush.msra.mxu0 0.0
      %419 = vmatpush.msra.mxu0 %v405
      %420 = vmatpush.msra.mxu0 %v400
      %421 = vmatpush.msra.mxu0 %v398
      %422 = vmatpush.msra.mxu0 %v396
      %423 = vmatpush.msra.mxu0 %v394
      %424 = vmatpush.msra.mxu0 %v392
      %425 = vmatpush.msra.mxu0 %v390
      %426 = vmatmul.f32.gmra.mxu0 %v189
      %v427 = vpop.f32.mrf.mxu0
      %v428 = vadd.f32 0.0, %v427
      %429 = vmatmul.f32.gmra.mxu0 %v192
      %v430 = vpop.f32.mrf.mxu0
      %v431 = vadd.f32 0.0, %v430
      %432 = vdwg.mxu0
      %433 = vmatpush.msra.mxu0 0.0
      %434 = vmatpush.msra.mxu0 0.0
      %435 = vmatpush.msra.mxu0 0.0
      %436 = vmatpush.msra.mxu0 0.0
      %437 = vmatpush.msra.mxu0 0.0
      %438 = vmatpush.msra.mxu0 0.0
      %439 = vmatpush.msra.mxu0 0.0
      %440 = vmatpush.msra.mxu0 0.0
      %441 = vmatpush.msra.mxu0 0.0
      %442 = vmatpush.msra.mxu0 %v408
      %443 = vmatpush.msra.mxu0 %v401
      %444 = vmatpush.msra.mxu0 %v399
      %445 = vmatpush.msra.mxu0 %v397
      %446 = vmatpush.msra.mxu0 %v395
      %447 = vmatpush.msra.mxu0 %v393
      %448 = vmatpush.msra.mxu0 %v391
      %449 = vmatmul.f32.gmra.mxu0 %v189
      %v450 = vpop.f32.mrf.mxu0
      %v451 = vadd.f32 0.0, %v450
      %452 = vmatmul.f32.gmra.mxu0 %v192
      %v453 = vpop.f32.mrf.mxu0
      %v454 = vadd.f32 0.0, %v453
      %455 = vdwg.mxu0
      %v456 = vmax.f32 %v385, %v428
      %v457 = vmax.f32 %v386, %v451
      %v458 = vmax.f32 %v387, %v431
      %v459 = vmax.f32 %v388, %v454
      %v460 = vld [vmem:[%s2] sm:$0xff]
      %v461 = vld [vmem:[%s2 + $0x8] sm:$0xf]
      %463 = vset.pattern.permute.xlu0 0
      %464 = vperm.xlu0 %463, %v460
      %v465 = vpop.permute.xlu0 %464
      %468 = vset.pattern.permute.xlu0 0
      %469 = vperm.xlu0 %468, %v461
      %v470 = vpop.permute.xlu0 %469
      %v472 = vadd.f32 %v456, %v465
      %v473 = vadd.f32 %v457, %v465
      %v474 = vadd.f32 %v458, %v470
      %v475 = vadd.f32 %v459, %v470
      %v476 = vmax.f32 %v472, 0.0
      %v477 = vmax.f32 %v473, 0.0
      %v478 = vmax.f32 %v474, 0.0
      %v479 = vmax.f32 %v475, 0.0
      %480 = vst [vmem:[%s170] sm:$0xff] %v476
      %vm481 = vcmask 556032
      %482 = vst.msk [vmem:[%s170 + $0x8] sm:$0xff] %vm481, %v477
      %483 = vst [vmem:[%s170 + $0x10] sm:$0xf] %v478
      %vm484 = vcmask 551936
      %485 = vst.msk [vmem:[%s170 + $0x18] sm:$0xf] %vm484, %v479
      %p486 = scmp.lt.s32.totalorder %s14, 1
      %s487 = scalar_select %p486, %s14, 1
      %s488 = smul.addr %s487, 4
      %s489 = smul.addr %s488, 8
      %s490 = scalar_lea.vmem %s3, %s489
      // Predicated region
      $region33: #{simple_net_forward.4} parent=31 // pred_check
        %p491 = pneg %p100
      $region34: #{simple_net_forward.4} parent=31 // pred_check_branch
        %493 = sbr.rel (%p491) target = $region36
      $region35: #{simple_net_forward.4} parent=31 // pred_region
        _
      $region36: #{simple_net_forward.4} parent=31 // pred_fallthru
        _
    $region32: #{simple_net_forward.4} parent=5 // pred_fallthru
      _
    %p494 = scmp.le.s32.totalorder 2, %s9
    // Predicated region
    $region37: #{simple_net_forward.4} parent=5 // pred_check
      %p495 = pneg %p494
    $region38: #{simple_net_forward.4} parent=5 // pred_check_branch
      %497 = sbr.rel (%p495) target = $region40
    $region39: #{simple_net_forward.4} parent=5 // pred_region
      %s498 = ssub.s32 %s9, 2
      // Predicated region
      $region41: #{simple_net_forward.4} parent=39 // pred_check
        %p499 = pneg %p106
      $region42: #{simple_net_forward.4} parent=39 // pred_check_branch
        %501 = sbr.rel (%p499) target = $region44
      $region43: #{simple_net_forward.4} parent=39 // pred_region
        %p502 = scmp.lt.s32.totalorder %s15, 1
        %s503 = scalar_select %p502, %s15, 1
        %s504 = smul.addr %s503, 4
        %s505 = smul.addr %s504, 8
        %s506 = scalar_lea.vmem %s3, %s505
      $region44: #{simple_net_forward.4} parent=39 // pred_fallthru
        _
    $region40: #{simple_net_forward.4} parent=5 // pred_fallthru
      _
  $region6: #{simple_net_forward.4} parent=0 // loop_footer
    %s13 = sadd.s32 1, %s9
  $region7: #{simple_net_forward.4} parent=0 // loop_footer_branch
    %8 = sbr.rel target = $region3
  $region8: #{simple_net_forward.4} parent=0 // loop_exit
    _

// kernel: simple_net_forward.5
$region0: #{simple_net_forward.5}
  #allocation0 [shape = 'u32[]', space=smem, size = 0x4, offset = 0x4, fixed_abs, tag = 'smem constant byte address 0x4 - core index']
  #allocation1 [shape = 'u32[72,128]{1,0:T(1,128)}', space=vmem, size = 0x9000, scoped, tag = 'internal scratch']
  %s0 = inlined_call_operand.vmem [shape: f32[2,2352], index: 0, kind: input, shape index: {}]
  %s1 = inlined_call_operand.vmem [shape: f32[2352,120], index: 1, kind: input, shape index: {}]
  %s2 = inlined_call_operand.vmem [shape: f32[1,120], index: 2, kind: input, shape index: {}]
  %s3 = inlined_call_operand.vmem [shape: f32[120,84], index: 3, kind: input, shape index: {}]
  %s4 = inlined_call_operand.vmem [shape: f32[1,84], index: 4, kind: input, shape index: {}]
  %s5 = inlined_call_operand.vmem [shape: f32[84,5], index: 5, kind: input, shape index: {}]
  %s6 = inlined_call_operand.vmem [shape: f32[1,5], index: 6, kind: input, shape index: {}]
  %s7 = inlined_call_operand.hbm [shape: f32[2,5], index: 7, kind: output, shape index: {}]
  %s8 = sld [smem:[#allocation0]]
  $region38: #{simple_net_forward.5} parent=0
    _
  %s10 = ssub.s32 1, %s8
  %s11 = scalar_select 0, %s10, %s8
  $region1: #{simple_net_forward.5} parent=0
    #allocation2 [shape = 'u8[1024]{0}', space=vmem, size = 0x400, scoped, tag = 'output window, operand 0, single buffered']
    #allocation3 [shape = 's32[1]{0}', space=sflag, size = 0x4, scoped, tag = 'scoped memory for simple_net_forward.5']
    %12 = vsyncpa [#allocation3], 0
    // Predicated region
    $region2: #{simple_net_forward.5} parent=1 // pred_check
      _
    $region3: #{simple_net_forward.5} parent=1 // pred_check_branch
      %14 = sbr.rel (0) target = $region5
    $region4: #{simple_net_forward.5} parent=1 // pred_region
      _
    $region5: #{simple_net_forward.5} parent=1 // pred_fallthru
      _
    // Predicated region
    $region6: #{simple_net_forward.5} parent=1 // pred_check
      _
    $region7: #{simple_net_forward.5} parent=1 // pred_check_branch
      %16 = sbr.rel (0) target = $region9
    $region8: #{simple_net_forward.5} parent=1 // pred_region
      _
    $region9: #{simple_net_forward.5} parent=1 // pred_fallthru
      _
    // Predicated region
    $region10: #{simple_net_forward.5} parent=1 // pred_check
      _
    $region11: #{simple_net_forward.5} parent=1 // pred_check_branch
      %18 = sbr.rel (0) target = $region13
    $region12: #{simple_net_forward.5} parent=1 // pred_region
      _
    $region13: #{simple_net_forward.5} parent=1 // pred_fallthru
      _
    // Predicated region
    $region14: #{simple_net_forward.5} parent=1 // pred_check
      _
    $region15: #{simple_net_forward.5} parent=1 // pred_check_branch
      %20 = sbr.rel (0) target = $region17
    $region16: #{simple_net_forward.5} parent=1 // pred_region
      _
    $region17: #{simple_net_forward.5} parent=1 // pred_fallthru
      _
    // Predicated region
    $region18: #{simple_net_forward.5} parent=1 // pred_check
      _
    $region19: #{simple_net_forward.5} parent=1 // pred_check_branch
      %22 = sbr.rel (0) target = $region21
    $region20: #{simple_net_forward.5} parent=1 // pred_region
      _
    $region21: #{simple_net_forward.5} parent=1 // pred_fallthru
      _
    // Predicated region
    $region22: #{simple_net_forward.5} parent=1 // pred_check
      _
    $region23: #{simple_net_forward.5} parent=1 // pred_check_branch
      %24 = sbr.rel (0) target = $region25
    $region24: #{simple_net_forward.5} parent=1 // pred_region
      _
    $region25: #{simple_net_forward.5} parent=1 // pred_fallthru
      _
    // Predicated region
    $region26: #{simple_net_forward.5} parent=1 // pred_check
      _
    $region27: #{simple_net_forward.5} parent=1 // pred_check_branch
      %26 = sbr.rel (0) target = $region29
    $region28: #{simple_net_forward.5} parent=1 // pred_region
      _
    $region29: #{simple_net_forward.5} parent=1 // pred_fallthru
      _
    %v27 = vld [vmem:[%s0] sm:$0xff]
    %v28 = vld [vmem:[%s0 + $0x8] sm:$0xff]
    %v29 = vld [vmem:[%s0 + $0x10] sm:$0xff]
    %v30 = vld [vmem:[%s0 + $0x18] sm:$0xff]
    %v31 = vld [vmem:[%s0 + $0x20] sm:$0x3f]
    %v32 = vld [vmem:[%s1] sm:$0xff]
    %v33 = vld [vmem:[%s1 + $0x8] sm:$0xff]
    %v34 = vld [vmem:[%s1 + $0x10] sm:$0xff]
    %v35 = vld [vmem:[%s1 + $0x18] sm:$0xff]
    %v36 = vld [vmem:[%s1 + $0x20] sm:$0xff]
    %v37 = vld [vmem:[%s1 + $0x28] sm:$0xff]
    %v38 = vld [vmem:[%s1 + $0x30] sm:$0xff]
    %v39 = vld [vmem:[%s1 + $0x38] sm:$0xff]
    %v40 = vld [vmem:[%s1 + $0x40] sm:$0xff]
    %v41 = vld [vmem:[%s1 + $0x48] sm:$0xff]
    %v42 = vld [vmem:[%s1 + $0x50] sm:$0xff]
    %v43 = vld [vmem:[%s1 + $0x58] sm:$0xff]
    %v44 = vld [vmem:[%s1 + $0x60] sm:$0xff]
    %v45 = vld [vmem:[%s1 + $0x68] sm:$0xff]
    %v46 = vld [vmem:[%s1 + $0x70] sm:$0xff]
    %v47 = vld [vmem:[%s1 + $0x78] sm:$0xff]
    %v48 = vld [vmem:[%s1 + $0x80] sm:$0xff]
    %v49 = vld [vmem:[%s1 + $0x88] sm:$0xff]
    %v50 = vld [vmem:[%s1 + $0x90] sm:$0xff]
    %v51 = vld [vmem:[%s1 + $0x98] sm:$0xff]
    %v52 = vld [vmem:[%s1 + $0xa0] sm:$0xff]
    %v53 = vld [vmem:[%s1 + $0xa8] sm:$0xff]
    %v54 = vld [vmem:[%s1 + $0xb0] sm:$0xff]
    %v55 = vld [vmem:[%s1 + $0xb8] sm:$0xff]
    %v56 = vld [vmem:[%s1 + $0xc0] sm:$0xff]
    %v57 = vld [vmem:[%s1 + $0xc8] sm:$0xff]
    %v58 = vld [vmem:[%s1 + $0xd0] sm:$0xff]
    %v59 = vld [vmem:[%s1 + $0xd8] sm:$0xff]
    %v60 = vld [vmem:[%s1 + $0xe0] sm:$0xff]
    %v61 = vld [vmem:[%s1 + $0xe8] sm:$0xff]
    %v62 = vld [vmem:[%s1 + $0xf0] sm:$0xff]
    %v63 = vld [vmem:[%s1 + $0xf8] sm:$0xff]
    %v64 = vld [vmem:[%s1 + $0x100] sm:$0xff]
    %v65 = vld [vmem:[%s1 + $0x108] sm:$0xff]
    %v66 = vld [vmem:[%s1 + $0x110] sm:$0xff]
    %v67 = vld [vmem:[%s1 + $0x118] sm:$0xff]
    %v68 = vld [vmem:[%s1 + $0x120] sm:$0xff]
    %v69 = vld [vmem:[%s1 + $0x128] sm:$0xff]
    %v70 = vld [vmem:[%s1 + $0x130] sm:$0xff]
    %v71 = vld [vmem:[%s1 + $0x138] sm:$0xff]
    %v72 = vld [vmem:[%s1 + $0x140] sm:$0xff]
    %v73 = vld [vmem:[%s1 + $0x148] sm:$0xff]
    %v74 = vld [vmem:[%s1 + $0x150] sm:$0xff]
    %v75 = vld [vmem:[%s1 + $0x158] sm:$0xff]
    %v76 = vld [vmem:[%s1 + $0x160] sm:$0xff]
    %v77 = vld [vmem:[%s1 + $0x168] sm:$0xff]
    %v78 = vld [vmem:[%s1 + $0x170] sm:$0xff]
    %v79 = vld [vmem:[%s1 + $0x178] sm:$0xff]
    %v80 = vld [vmem:[%s1 + $0x180] sm:$0xff]
    %v81 = vld [vmem:[%s1 + $0x188] sm:$0xff]
    %v82 = vld [vmem:[%s1 + $0x190] sm:$0xff]
    %v83 = vld [vmem:[%s1 + $0x198] sm:$0xff]
    %v84 = vld [vmem:[%s1 + $0x1a0] sm:$0xff]
    %v85 = vld [vmem:[%s1 + $0x1a8] sm:$0xff]
    %v86 = vld [vmem:[%s1 + $0x1b0] sm:$0xff]
    %v87 = vld [vmem:[%s1 + $0x1b8] sm:$0xff]
    %v88 = vld [vmem:[%s1 + $0x1c0] sm:$0xff]
    %v89 = vld [vmem:[%s1 + $0x1c8] sm:$0xff]
    %v90 = vld [vmem:[%s1 + $0x1d0] sm:$0xff]
    %v91 = vld [vmem:[%s1 + $0x1d8] sm:$0xff]
    %v92 = vld [vmem:[%s1 + $0x1e0] sm:$0xff]
    %v93 = vld [vmem:[%s1 + $0x1e8] sm:$0xff]
    %v94 = vld [vmem:[%s1 + $0x1f0] sm:$0xff]
    %v95 = vld [vmem:[%s1 + $0x1f8] sm:$0xff]
    %v96 = vld [vmem:[%s1 + $0x200] sm:$0xff]
    %v97 = vld [vmem:[%s1 + $0x208] sm:$0xff]
    %v98 = vld [vmem:[%s1 + $0x210] sm:$0xff]
    %v99 = vld [vmem:[%s1 + $0x218] sm:$0xff]
    %v100 = vld [vmem:[%s1 + $0x220] sm:$0xff]
    %v101 = vld [vmem:[%s1 + $0x228] sm:$0xff]
    %v102 = vld [vmem:[%s1 + $0x230] sm:$0xff]
    %v103 = vld [vmem:[%s1 + $0x238] sm:$0xff]
    %v104 = vld [vmem:[%s1 + $0x240] sm:$0xff]
    %v105 = vld [vmem:[%s1 + $0x248] sm:$0xff]
    %v106 = vld [vmem:[%s1 + $0x250] sm:$0xff]
    %v107 = vld [vmem:[%s1 + $0x258] sm:$0xff]
    %v108 = vld [vmem:[%s1 + $0x260] sm:$0xff]
    %v109 = vld [vmem:[%s1 + $0x268] sm:$0xff]
    %v110 = vld [vmem:[%s1 + $0x270] sm:$0xff]
    %v111 = vld [vmem:[%s1 + $0x278] sm:$0xff]
    %v112 = vld [vmem:[%s1 + $0x280] sm:$0xff]
    %v113 = vld [vmem:[%s1 + $0x288] sm:$0xff]
    %v114 = vld [vmem:[%s1 + $0x290] sm:$0xff]
    %v115 = vld [vmem:[%s1 + $0x298] sm:$0xff]
    %v116 = vld [vmem:[%s1 + $0x2a0] sm:$0xff]
    %v117 = vld [vmem:[%s1 + $0x2a8] sm:$0xff]
    %v118 = vld [vmem:[%s1 + $0x2b0] sm:$0xff]
    %v119 = vld [vmem:[%s1 + $0x2b8] sm:$0xff]
    %v120 = vld [vmem:[%s1 + $0x2c0] sm:$0xff]
    %v121 = vld [vmem:[%s1 + $0x2c8] sm:$0xff]
    %v122 = vld [vmem:[%s1 + $0x2d0] sm:$0xff]
    %v123 = vld [vmem:[%s1 + $0x2d8] sm:$0xff]
    %v124 = vld [vmem:[%s1 + $0x2e0] sm:$0xff]
    %v125 = vld [vmem:[%s1 + $0x2e8] sm:$0xff]
    %v126 = vld [vmem:[%s1 + $0x2f0] sm:$0xff]
    %v127 = vld [vmem:[%s1 + $0x2f8] sm:$0xff]
    %v128 = vld [vmem:[%s1 + $0x300] sm:$0xff]
    %v129 = vld [vmem:[%s1 + $0x308] sm:$0xff]
    %v130 = vld [vmem:[%s1 + $0x310] sm:$0xff]
    %v131 = vld [vmem:[%s1 + $0x318] sm:$0xff]
    %v132 = vld [vmem:[%s1 + $0x320] sm:$0xff]
    %v133 = vld [vmem:[%s1 + $0x328] sm:$0xff]
    %v134 = vld [vmem:[%s1 + $0x330] sm:$0xff]
    %v135 = vld [vmem:[%s1 + $0x338] sm:$0xff]
    %v136 = vld [vmem:[%s1 + $0x340] sm:$0xff]
    %v137 = vld [vmem:[%s1 + $0x348] sm:$0xff]
    %v138 = vld [vmem:[%s1 + $0x350] sm:$0xff]
    %v139 = vld [vmem:[%s1 + $0x358] sm:$0xff]
    %v140 = vld [vmem:[%s1 + $0x360] sm:$0xff]
    %v141 = vld [vmem:[%s1 + $0x368] sm:$0xff]
    %v142 = vld [vmem:[%s1 + $0x370] sm:$0xff]
    %v143 = vld [vmem:[%s1 + $0x378] sm:$0xff]
    %v144 = vld [vmem:[%s1 + $0x380] sm:$0xff]
    %v145 = vld [vmem:[%s1 + $0x388] sm:$0xff]
    %v146 = vld [vmem:[%s1 + $0x390] sm:$0xff]
    %v147 = vld [vmem:[%s1 + $0x398] sm:$0xff]
    %v148 = vld [vmem:[%s1 + $0x3a0] sm:$0xff]
    %v149 = vld [vmem:[%s1 + $0x3a8] sm:$0xff]
    %v150 = vld [vmem:[%s1 + $0x3b0] sm:$0xff]
    %v151 = vld [vmem:[%s1 + $0x3b8] sm:$0xff]
    %v152 = vld [vmem:[%s1 + $0x3c0] sm:$0xff]
    %v153 = vld [vmem:[%s1 + $0x3c8] sm:$0xff]
    %v154 = vld [vmem:[%s1 + $0x3d0] sm:$0xff]
    %v155 = vld [vmem:[%s1 + $0x3d8] sm:$0xff]
    %v156 = vld [vmem:[%s1 + $0x3e0] sm:$0xff]
    %v157 = vld [vmem:[%s1 + $0x3e8] sm:$0xff]
    %v158 = vld [vmem:[%s1 + $0x3f0] sm:$0xff]
    %v159 = vld [vmem:[%s1 + $0x3f8] sm:$0xff]
    %v160 = vld [vmem:[%s1 + $0x400] sm:$0xff]
    %v161 = vld [vmem:[%s1 + $0x408] sm:$0xff]
    %v162 = vld [vmem:[%s1 + $0x410] sm:$0xff]
    %v163 = vld [vmem:[%s1 + $0x418] sm:$0xff]
    %v164 = vld [vmem:[%s1 + $0x420] sm:$0xff]
    %v165 = vld [vmem:[%s1 + $0x428] sm:$0xff]
    %v166 = vld [vmem:[%s1 + $0x430] sm:$0xff]
    %v167 = vld [vmem:[%s1 + $0x438] sm:$0xff]
    %v168 = vld [vmem:[%s1 + $0x440] sm:$0xff]
    %v169 = vld [vmem:[%s1 + $0x448] sm:$0xff]
    %v170 = vld [vmem:[%s1 + $0x450] sm:$0xff]
    %v171 = vld [vmem:[%s1 + $0x458] sm:$0xff]
    %v172 = vld [vmem:[%s1 + $0x460] sm:$0xff]
    %v173 = vld [vmem:[%s1 + $0x468] sm:$0xff]
    %v174 = vld [vmem:[%s1 + $0x470] sm:$0xff]
    %v175 = vld [vmem:[%s1 + $0x478] sm:$0xff]
    %v176 = vld [vmem:[%s1 + $0x480] sm:$0xff]
    %v177 = vld [vmem:[%s1 + $0x488] sm:$0xff]
    %v178 = vld [vmem:[%s1 + $0x490] sm:$0xff]
    %v179 = vld [vmem:[%s1 + $0x498] sm:$0xff]
    %v180 = vld [vmem:[%s1 + $0x4a0] sm:$0xff]
    %v181 = vld [vmem:[%s1 + $0x4a8] sm:$0xff]
    %v182 = vld [vmem:[%s1 + $0x4b0] sm:$0xff]
    %v183 = vld [vmem:[%s1 + $0x4b8] sm:$0xff]
    %v184 = vld [vmem:[%s1 + $0x4c0] sm:$0xff]
    %v185 = vld [vmem:[%s1 + $0x4c8] sm:$0xff]
    %v186 = vld [vmem:[%s1 + $0x4d0] sm:$0xff]
    %v187 = vld [vmem:[%s1 + $0x4d8] sm:$0xff]
    %v188 = vld [vmem:[%s1 + $0x4e0] sm:$0xff]
    %v189 = vld [vmem:[%s1 + $0x4e8] sm:$0xff]
    %v190 = vld [vmem:[%s1 + $0x4f0] sm:$0xff]
    %v191 = vld [vmem:[%s1 + $0x4f8] sm:$0xff]
    %v192 = vld [vmem:[%s1 + $0x500] sm:$0xff]
    %v193 = vld [vmem:[%s1 + $0x508] sm:$0xff]
    %v194 = vld [vmem:[%s1 + $0x510] sm:$0xff]
    %v195 = vld [vmem:[%s1 + $0x518] sm:$0xff]
    %v196 = vld [vmem:[%s1 + $0x520] sm:$0xff]
    %v197 = vld [vmem:[%s1 + $0x528] sm:$0xff]
    %v198 = vld [vmem:[%s1 + $0x530] sm:$0xff]
    %v199 = vld [vmem:[%s1 + $0x538] sm:$0xff]
    %v200 = vld [vmem:[%s1 + $0x540] sm:$0xff]
    %v201 = vld [vmem:[%s1 + $0x548] sm:$0xff]
    %v202 = vld [vmem:[%s1 + $0x550] sm:$0xff]
    %v203 = vld [vmem:[%s1 + $0x558] sm:$0xff]
    %v204 = vld [vmem:[%s1 + $0x560] sm:$0xff]
    %v205 = vld [vmem:[%s1 + $0x568] sm:$0xff]
    %v206 = vld [vmem:[%s1 + $0x570] sm:$0xff]
    %v207 = vld [vmem:[%s1 + $0x578] sm:$0xff]
    %v208 = vld [vmem:[%s1 + $0x580] sm:$0xff]
    %v209 = vld [vmem:[%s1 + $0x588] sm:$0xff]
    %v210 = vld [vmem:[%s1 + $0x590] sm:$0xff]
    %v211 = vld [vmem:[%s1 + $0x598] sm:$0xff]
    %v212 = vld [vmem:[%s1 + $0x5a0] sm:$0xff]
    %v213 = vld [vmem:[%s1 + $0x5a8] sm:$0xff]
    %v214 = vld [vmem:[%s1 + $0x5b0] sm:$0xff]
    %v215 = vld [vmem:[%s1 + $0x5b8] sm:$0xff]
    %v216 = vld [vmem:[%s1 + $0x5c0] sm:$0xff]
    %v217 = vld [vmem:[%s1 + $0x5c8] sm:$0xff]
    %v218 = vld [vmem:[%s1 + $0x5d0] sm:$0xff]
    %v219 = vld [vmem:[%s1 + $0x5d8] sm:$0xff]
    %v220 = vld [vmem:[%s1 + $0x5e0] sm:$0xff]
    %v221 = vld [vmem:[%s1 + $0x5e8] sm:$0xff]
    %v222 = vld [vmem:[%s1 + $0x5f0] sm:$0xff]
    %v223 = vld [vmem:[%s1 + $0x5f8] sm:$0xff]
    %v224 = vld [vmem:[%s1 + $0x600] sm:$0xff]
    %v225 = vld [vmem:[%s1 + $0x608] sm:$0xff]
    %v226 = vld [vmem:[%s1 + $0x610] sm:$0xff]
    %v227 = vld [vmem:[%s1 + $0x618] sm:$0xff]
    %v228 = vld [vmem:[%s1 + $0x620] sm:$0xff]
    %v229 = vld [vmem:[%s1 + $0x628] sm:$0xff]
    %v230 = vld [vmem:[%s1 + $0x630] sm:$0xff]
    %v231 = vld [vmem:[%s1 + $0x638] sm:$0xff]
    %v232 = vld [vmem:[%s1 + $0x640] sm:$0xff]
    %v233 = vld [vmem:[%s1 + $0x648] sm:$0xff]
    %v234 = vld [vmem:[%s1 + $0x650] sm:$0xff]
    %v235 = vld [vmem:[%s1 + $0x658] sm:$0xff]
    %v236 = vld [vmem:[%s1 + $0x660] sm:$0xff]
    %v237 = vld [vmem:[%s1 + $0x668] sm:$0xff]
    %v238 = vld [vmem:[%s1 + $0x670] sm:$0xff]
    %v239 = vld [vmem:[%s1 + $0x678] sm:$0xff]
    %v240 = vld [vmem:[%s1 + $0x680] sm:$0xff]
    %v241 = vld [vmem:[%s1 + $0x688] sm:$0xff]
    %v242 = vld [vmem:[%s1 + $0x690] sm:$0xff]
    %v243 = vld [vmem:[%s1 + $0x698] sm:$0xff]
    %v244 = vld [vmem:[%s1 + $0x6a0] sm:$0xff]
    %v245 = vld [vmem:[%s1 + $0x6a8] sm:$0xff]
    %v246 = vld [vmem:[%s1 + $0x6b0] sm:$0xff]
    %v247 = vld [vmem:[%s1 + $0x6b8] sm:$0xff]
    %v248 = vld [vmem:[%s1 + $0x6c0] sm:$0xff]
    %v249 = vld [vmem:[%s1 + $0x6c8] sm:$0xff]
    %v250 = vld [vmem:[%s1 + $0x6d0] sm:$0xff]
    %v251 = vld [vmem:[%s1 + $0x6d8] sm:$0xff]
    %v252 = vld [vmem:[%s1 + $0x6e0] sm:$0xff]
    %v253 = vld [vmem:[%s1 + $0x6e8] sm:$0xff]
    %v254 = vld [vmem:[%s1 + $0x6f0] sm:$0xff]
    %v255 = vld [vmem:[%s1 + $0x6f8] sm:$0xff]
    %v256 = vld [vmem:[%s1 + $0x700] sm:$0xff]
    %v257 = vld [vmem:[%s1 + $0x708] sm:$0xff]
    %v258 = vld [vmem:[%s1 + $0x710] sm:$0xff]
    %v259 = vld [vmem:[%s1 + $0x718] sm:$0xff]
    %v260 = vld [vmem:[%s1 + $0x720] sm:$0xff]
    %v261 = vld [vmem:[%s1 + $0x728] sm:$0xff]
    %v262 = vld [vmem:[%s1 + $0x730] sm:$0xff]
    %v263 = vld [vmem:[%s1 + $0x738] sm:$0xff]
    %v264 = vld [vmem:[%s1 + $0x740] sm:$0xff]
    %v265 = vld [vmem:[%s1 + $0x748] sm:$0xff]
    %v266 = vld [vmem:[%s1 + $0x750] sm:$0xff]
    %v267 = vld [vmem:[%s1 + $0x758] sm:$0xff]
    %v268 = vld [vmem:[%s1 + $0x760] sm:$0xff]
    %v269 = vld [vmem:[%s1 + $0x768] sm:$0xff]
    %v270 = vld [vmem:[%s1 + $0x770] sm:$0xff]
    %v271 = vld [vmem:[%s1 + $0x778] sm:$0xff]
    %v272 = vld [vmem:[%s1 + $0x780] sm:$0xff]
    %v273 = vld [vmem:[%s1 + $0x788] sm:$0xff]
    %v274 = vld [vmem:[%s1 + $0x790] sm:$0xff]
    %v275 = vld [vmem:[%s1 + $0x798] sm:$0xff]
    %v276 = vld [vmem:[%s1 + $0x7a0] sm:$0xff]
    %v277 = vld [vmem:[%s1 + $0x7a8] sm:$0xff]
    %v278 = vld [vmem:[%s1 + $0x7b0] sm:$0xff]
    %v279 = vld [vmem:[%s1 + $0x7b8] sm:$0xff]
    %v280 = vld [vmem:[%s1 + $0x7c0] sm:$0xff]
    %v281 = vld [vmem:[%s1 + $0x7c8] sm:$0xff]
    %v282 = vld [vmem:[%s1 + $0x7d0] sm:$0xff]
    %v283 = vld [vmem:[%s1 + $0x7d8] sm:$0xff]
    %v284 = vld [vmem:[%s1 + $0x7e0] sm:$0xff]
    %v285 = vld [vmem:[%s1 + $0x7e8] sm:$0xff]
    %v286 = vld [vmem:[%s1 + $0x7f0] sm:$0xff]
    %v287 = vld [vmem:[%s1 + $0x7f8] sm:$0xff]
    %v288 = vld [vmem:[%s1 + $0x800] sm:$0xff]
    %v289 = vld [vmem:[%s1 + $0x808] sm:$0xff]
    %v290 = vld [vmem:[%s1 + $0x810] sm:$0xff]
    %v291 = vld [vmem:[%s1 + $0x818] sm:$0xff]
    %v292 = vld [vmem:[%s1 + $0x820] sm:$0xff]
    %v293 = vld [vmem:[%s1 + $0x828] sm:$0xff]
    %v294 = vld [vmem:[%s1 + $0x830] sm:$0xff]
    %v295 = vld [vmem:[%s1 + $0x838] sm:$0xff]
    %v296 = vld [vmem:[%s1 + $0x840] sm:$0xff]
    %v297 = vld [vmem:[%s1 + $0x848] sm:$0xff]
    %v298 = vld [vmem:[%s1 + $0x850] sm:$0xff]
    %v299 = vld [vmem:[%s1 + $0x858] sm:$0xff]
    %v300 = vld [vmem:[%s1 + $0x860] sm:$0xff]
    %v301 = vld [vmem:[%s1 + $0x868] sm:$0xff]
    %v302 = vld [vmem:[%s1 + $0x870] sm:$0xff]
    %v303 = vld [vmem:[%s1 + $0x878] sm:$0xff]
    %v304 = vld [vmem:[%s1 + $0x880] sm:$0xff]
    %v305 = vld [vmem:[%s1 + $0x888] sm:$0xff]
    %v306 = vld [vmem:[%s1 + $0x890] sm:$0xff]
    %v307 = vld [vmem:[%s1 + $0x898] sm:$0xff]
    %v308 = vld [vmem:[%s1 + $0x8a0] sm:$0xff]
    %v309 = vld [vmem:[%s1 + $0x8a8] sm:$0xff]
    %v310 = vld [vmem:[%s1 + $0x8b0] sm:$0xff]
    %v311 = vld [vmem:[%s1 + $0x8b8] sm:$0xff]
    %v312 = vld [vmem:[%s1 + $0x8c0] sm:$0xff]
    %v313 = vld [vmem:[%s1 + $0x8c8] sm:$0xff]
    %v314 = vld [vmem:[%s1 + $0x8d0] sm:$0xff]
    %v315 = vld [vmem:[%s1 + $0x8d8] sm:$0xff]
    %v316 = vld [vmem:[%s1 + $0x8e0] sm:$0xff]
    %v317 = vld [vmem:[%s1 + $0x8e8] sm:$0xff]
    %v318 = vld [vmem:[%s1 + $0x8f0] sm:$0xff]
    %v319 = vld [vmem:[%s1 + $0x8f8] sm:$0xff]
    %v320 = vld [vmem:[%s1 + $0x900] sm:$0xff]
    %v321 = vld [vmem:[%s1 + $0x908] sm:$0xff]
    %v322 = vld [vmem:[%s1 + $0x910] sm:$0xff]
    %v323 = vld [vmem:[%s1 + $0x918] sm:$0xff]
    %v324 = vld [vmem:[%s1 + $0x920] sm:$0xff]
    %v325 = vld [vmem:[%s1 + $0x928] sm:$0xff]
    %v326 = vld [vmem:[%s2] sm:$0x1]
    %v328 = vperm.slane %v326, 0
    %335 = vst [vmem:[#allocation1] ss:$4 sm:$0xff] %v27
    %s336 = scalar_lea.vmem [#allocation1], 32
    %337 = vst [vmem:[%s336] ss:$4 sm:$0xff] %v28
    %v338 = vld.sshfl [vmem:[#allocation1] sm:$0xff pattern:$0x73625140]
    %v339 = vld.sshfl [vmem:[#allocation1 + $0x8] sm:$0xff pattern:$0x73625140]
    %v340 = vld.sshfl [vmem:[#allocation1 + $0x10] sm:$0xff pattern:$0x73625140]
    %v341 = vld.sshfl [vmem:[#allocation1 + $0x18] sm:$0xff pattern:$0x73625140]
    %v342 = vld.sshfl [vmem:[#allocation1 + $0x20] sm:$0xff pattern:$0x73625140]
    %v343 = vld.sshfl [vmem:[#allocation1 + $0x28] sm:$0xff pattern:$0x73625140]
    %v344 = vld.sshfl [vmem:[#allocation1 + $0x30] sm:$0xff pattern:$0x73625140]
    %v345 = vld.sshfl [vmem:[#allocation1 + $0x38] sm:$0xff pattern:$0x73625140]
    %346 = vst [vmem:[#allocation1] ss:$4 sm:$0xff] %v29
    %347 = vst [vmem:[%s336] ss:$4 sm:$0xff] %v30
    %v348 = vld.sshfl [vmem:[#allocation1] sm:$0xff pattern:$0x73625140]
    %v349 = vld.sshfl [vmem:[#allocation1 + $0x8] sm:$0xff pattern:$0x73625140]
    %v350 = vld.sshfl [vmem:[#allocation1 + $0x10] sm:$0xff pattern:$0x73625140]
    %v351 = vld.sshfl [vmem:[#allocation1 + $0x18] sm:$0xff pattern:$0x73625140]
    %v352 = vld.sshfl [vmem:[#allocation1 + $0x20] sm:$0xff pattern:$0x73625140]
    %v353 = vld.sshfl [vmem:[#allocation1 + $0x28] sm:$0xff pattern:$0x73625140]
    %v354 = vld.sshfl [vmem:[#allocation1 + $0x30] sm:$0xff pattern:$0x73625140]
    %v355 = vld.sshfl [vmem:[#allocation1 + $0x38] sm:$0xff pattern:$0x73625140]
    %356 = vst [vmem:[#allocation1] ss:$4 sm:$0xff] %v31
    %v357 = vld.sshfl [vmem:[#allocation1] sm:$0xff pattern:$0x73625140]
    %v358 = vld.sshfl [vmem:[#allocation1 + $0x8] sm:$0xff pattern:$0x73625140]
    %v359 = vld.sshfl [vmem:[#allocation1 + $0x10] sm:$0xff pattern:$0x73625140]
    %vm378 = vcmask 392192
    %v379 = vsel %vm378, %v359, 0
    %381 = vmatpush.msra.mxu0 %v47
    %382 = vmatpush.msra.mxu0 %v46
    %383 = vmatpush.msra.mxu0 %v45
    %384 = vmatpush.msra.mxu0 %v44
    %385 = vmatpush.msra.mxu0 %v43
    %386 = vmatpush.msra.mxu0 %v42
    %387 = vmatpush.msra.mxu0 %v41
    %388 = vmatpush.msra.mxu0 %v40
    %389 = vmatpush.msra.mxu0 %v39
    %390 = vmatpush.msra.mxu0 %v38
    %391 = vmatpush.msra.mxu0 %v37
    %392 = vmatpush.msra.mxu0 %v36
    %393 = vmatpush.msra.mxu0 %v35
    %394 = vmatpush.msra.mxu0 %v34
    %395 = vmatpush.msra.mxu0 %v33
    %396 = vmatpush.msra.mxu0 %v32
    %397 = vmatmul.f32.gmra.mxu0 %v338
    %v398 = vpop.f32.mrf.mxu0
    %v399 = vadd.f32 %v328, %v398
    %400 = vdwg.mxu0
    %401 = vmatpush.msra.mxu0 %v63
    %402 = vmatpush.msra.mxu0 %v62
    %403 = vmatpush.msra.mxu0 %v61
    %404 = vmatpush.msra.mxu0 %v60
    %405 = vmatpush.msra.mxu0 %v59
    %406 = vmatpush.msra.mxu0 %v58
    %407 = vmatpush.msra.mxu0 %v57
    %408 = vmatpush.msra.mxu0 %v56
    %409 = vmatpush.msra.mxu0 %v55
    %410 = vmatpush.msra.mxu0 %v54
    %411 = vmatpush.msra.mxu0 %v53
    %412 = vmatpush.msra.mxu0 %v52
    %413 = vmatpush.msra.mxu0 %v51
    %414 = vmatpush.msra.mxu0 %v50
    %415 = vmatpush.msra.mxu0 %v49
    %416 = vmatpush.msra.mxu0 %v48
    %417 = vmatmul.f32.gmra.mxu0 %v339
    %v418 = vpop.f32.mrf.mxu0
    %v419 = vadd.f32 %v399, %v418
    %420 = vdwg.mxu0
    %421 = vmatpush.msra.mxu0 %v79
    %422 = vmatpush.msra.mxu0 %v78
    %423 = vmatpush.msra.mxu0 %v77
    %424 = vmatpush.msra.mxu0 %v76
    %425 = vmatpush.msra.mxu0 %v75
    %426 = vmatpush.msra.mxu0 %v74
    %427 = vmatpush.msra.mxu0 %v73
    %428 = vmatpush.msra.mxu0 %v72
    %429 = vmatpush.msra.mxu0 %v71
    %430 = vmatpush.msra.mxu0 %v70
    %431 = vmatpush.msra.mxu0 %v69
    %432 = vmatpush.msra.mxu0 %v68
    %433 = vmatpush.msra.mxu0 %v67
    %434 = vmatpush.msra.mxu0 %v66
    %435 = vmatpush.msra.mxu0 %v65
    %436 = vmatpush.msra.mxu0 %v64
    %437 = vmatmul.f32.gmra.mxu0 %v340
    %v438 = vpop.f32.mrf.mxu0
    %v439 = vadd.f32 %v419, %v438
    %440 = vdwg.mxu0
    %441 = vmatpush.msra.mxu0 %v95
    %442 = vmatpush.msra.mxu0 %v94
    %443 = vmatpush.msra.mxu0 %v93
    %444 = vmatpush.msra.mxu0 %v92
    %445 = vmatpush.msra.mxu0 %v91
    %446 = vmatpush.msra.mxu0 %v90
    %447 = vmatpush.msra.mxu0 %v89
    %448 = vmatpush.msra.mxu0 %v88
    %449 = vmatpush.msra.mxu0 %v87
    %450 = vmatpush.msra.mxu0 %v86
    %451 = vmatpush.msra.mxu0 %v85
    %452 = vmatpush.msra.mxu0 %v84
    %453 = vmatpush.msra.mxu0 %v83
    %454 = vmatpush.msra.mxu0 %v82
    %455 = vmatpush.msra.mxu0 %v81
    %456 = vmatpush.msra.mxu0 %v80
    %457 = vmatmul.f32.gmra.mxu0 %v341
    %v458 = vpop.f32.mrf.mxu0
    %v459 = vadd.f32 %v439, %v458
    %460 = vdwg.mxu0
    %461 = vmatpush.msra.mxu0 %v111
    %462 = vmatpush.msra.mxu0 %v110
    %463 = vmatpush.msra.mxu0 %v109
    %464 = vmatpush.msra.mxu0 %v108
    %465 = vmatpush.msra.mxu0 %v107
    %466 = vmatpush.msra.mxu0 %v106
    %467 = vmatpush.msra.mxu0 %v105
    %468 = vmatpush.msra.mxu0 %v104
    %469 = vmatpush.msra.mxu0 %v103
    %470 = vmatpush.msra.mxu0 %v102
    %471 = vmatpush.msra.mxu0 %v101
    %472 = vmatpush.msra.mxu0 %v100
    %473 = vmatpush.msra.mxu0 %v99
    %474 = vmatpush.msra.mxu0 %v98
    %475 = vmatpush.msra.mxu0 %v97
    %476 = vmatpush.msra.mxu0 %v96
    %477 = vmatmul.f32.gmra.mxu0 %v342
    %v478 = vpop.f32.mrf.mxu0
    %v479 = vadd.f32 %v459, %v478
    %480 = vdwg.mxu0
    %481 = vmatpush.msra.mxu0 %v127
    %482 = vmatpush.msra.mxu0 %v126
    %483 = vmatpush.msra.mxu0 %v125
    %484 = vmatpush.msra.mxu0 %v124
    %485 = vmatpush.msra.mxu0 %v123
    %486 = vmatpush.msra.mxu0 %v122
    %487 = vmatpush.msra.mxu0 %v121
    %488 = vmatpush.msra.mxu0 %v120
    %489 = vmatpush.msra.mxu0 %v119
    %490 = vmatpush.msra.mxu0 %v118
    %491 = vmatpush.msra.mxu0 %v117
    %492 = vmatpush.msra.mxu0 %v116
    %493 = vmatpush.msra.mxu0 %v115
    %494 = vmatpush.msra.mxu0 %v114
    %495 = vmatpush.msra.mxu0 %v113
    %496 = vmatpush.msra.mxu0 %v112
    %497 = vmatmul.f32.gmra.mxu0 %v343
    %v498 = vpop.f32.mrf.mxu0
    %v499 = vadd.f32 %v479, %v498
    %500 = vdwg.mxu0
    %501 = vmatpush.msra.mxu0 %v143
    %502 = vmatpush.msra.mxu0 %v142
    %503 = vmatpush.msra.mxu0 %v141
    %504 = vmatpush.msra.mxu0 %v140
    %505 = vmatpush.msra.mxu0 %v139
    %506 = vmatpush.msra.mxu0 %v138
    %507 = vmatpush.msra.mxu0 %v137
    %508 = vmatpush.msra.mxu0 %v136
    %509 = vmatpush.msra.mxu0 %v135
    %510 = vmatpush.msra.mxu0 %v134
    %511 = vmatpush.msra.mxu0 %v133
    %512 = vmatpush.msra.mxu0 %v132
    %513 = vmatpush.msra.mxu0 %v131
    %514 = vmatpush.msra.mxu0 %v130
    %515 = vmatpush.msra.mxu0 %v129
    %516 = vmatpush.msra.mxu0 %v128
    %517 = vmatmul.f32.gmra.mxu0 %v344
    %v518 = vpop.f32.mrf.mxu0
    %v519 = vadd.f32 %v499, %v518
    %520 = vdwg.mxu0
    %521 = vmatpush.msra.mxu0 %v159
    %522 = vmatpush.msra.mxu0 %v158
    %523 = vmatpush.msra.mxu0 %v157
    %524 = vmatpush.msra.mxu0 %v156
    %525 = vmatpush.msra.mxu0 %v155
    %526 = vmatpush.msra.mxu0 %v154
    %527 = vmatpush.msra.mxu0 %v153
    %528 = vmatpush.msra.mxu0 %v152
    %529 = vmatpush.msra.mxu0 %v151
    %530 = vmatpush.msra.mxu0 %v150
    %531 = vmatpush.msra.mxu0 %v149
    %532 = vmatpush.msra.mxu0 %v148
    %533 = vmatpush.msra.mxu0 %v147
    %534 = vmatpush.msra.mxu0 %v146
    %535 = vmatpush.msra.mxu0 %v145
    %536 = vmatpush.msra.mxu0 %v144
    %537 = vmatmul.f32.gmra.mxu0 %v345
    %v538 = vpop.f32.mrf.mxu0
    %v539 = vadd.f32 %v519, %v538
    %540 = vdwg.mxu0
    %541 = vmatpush.msra.mxu0 %v175
    %542 = vmatpush.msra.mxu0 %v174
    %543 = vmatpush.msra.mxu0 %v173
    %544 = vmatpush.msra.mxu0 %v172
    %545 = vmatpush.msra.mxu0 %v171
    %546 = vmatpush.msra.mxu0 %v170
    %547 = vmatpush.msra.mxu0 %v169
    %548 = vmatpush.msra.mxu0 %v168
    %549 = vmatpush.msra.mxu0 %v167
    %550 = vmatpush.msra.mxu0 %v166
    %551 = vmatpush.msra.mxu0 %v165
    %552 = vmatpush.msra.mxu0 %v164
    %553 = vmatpush.msra.mxu0 %v163
    %554 = vmatpush.msra.mxu0 %v162
    %555 = vmatpush.msra.mxu0 %v161
    %556 = vmatpush.msra.mxu0 %v160
    %557 = vmatmul.f32.gmra.mxu0 %v348
    %v558 = vpop.f32.mrf.mxu0
    %v559 = vadd.f32 %v539, %v558
    %560 = vdwg.mxu0
    %561 = vmatpush.msra.mxu0 %v191
    %562 = vmatpush.msra.mxu0 %v190
    %563 = vmatpush.msra.mxu0 %v189
    %564 = vmatpush.msra.mxu0 %v188
    %565 = vmatpush.msra.mxu0 %v187
    %566 = vmatpush.msra.mxu0 %v186
    %567 = vmatpush.msra.mxu0 %v185
    %568 = vmatpush.msra.mxu0 %v184
    %569 = vmatpush.msra.mxu0 %v183
    %570 = vmatpush.msra.mxu0 %v182
    %571 = vmatpush.msra.mxu0 %v181
    %572 = vmatpush.msra.mxu0 %v180
    %573 = vmatpush.msra.mxu0 %v179
    %574 = vmatpush.msra.mxu0 %v178
    %575 = vmatpush.msra.mxu0 %v177
    %576 = vmatpush.msra.mxu0 %v176
    %577 = vmatmul.f32.gmra.mxu0 %v349
    %v578 = vpop.f32.mrf.mxu0
    %v579 = vadd.f32 %v559, %v578
    %580 = vdwg.mxu0
    %581 = vmatpush.msra.mxu0 %v207
    %582 = vmatpush.msra.mxu0 %v206
    %583 = vmatpush.msra.mxu0 %v205
    %584 = vmatpush.msra.mxu0 %v204
    %585 = vmatpush.msra.mxu0 %v203
    %586 = vmatpush.msra.mxu0 %v202
    %587 = vmatpush.msra.mxu0 %v201
    %588 = vmatpush.msra.mxu0 %v200
    %589 = vmatpush.msra.mxu0 %v199
    %590 = vmatpush.msra.mxu0 %v198
    %591 = vmatpush.msra.mxu0 %v197
    %592 = vmatpush.msra.mxu0 %v196
    %593 = vmatpush.msra.mxu0 %v195
    %594 = vmatpush.msra.mxu0 %v194
    %595 = vmatpush.msra.mxu0 %v193
    %596 = vmatpush.msra.mxu0 %v192
    %597 = vmatmul.f32.gmra.mxu0 %v350
    %v598 = vpop.f32.mrf.mxu0
    %v599 = vadd.f32 %v579, %v598
    %600 = vdwg.mxu0
    %601 = vmatpush.msra.mxu0 %v223
    %602 = vmatpush.msra.mxu0 %v222
    %603 = vmatpush.msra.mxu0 %v221
    %604 = vmatpush.msra.mxu0 %v220
    %605 = vmatpush.msra.mxu0 %v219
    %606 = vmatpush.msra.mxu0 %v218
    %607 = vmatpush.msra.mxu0 %v217
    %608 = vmatpush.msra.mxu0 %v216
    %609 = vmatpush.msra.mxu0 %v215
    %610 = vmatpush.msra.mxu0 %v214
    %611 = vmatpush.msra.mxu0 %v213
    %612 = vmatpush.msra.mxu0 %v212
    %613 = vmatpush.msra.mxu0 %v211
    %614 = vmatpush.msra.mxu0 %v210
    %615 = vmatpush.msra.mxu0 %v209
    %616 = vmatpush.msra.mxu0 %v208
    %617 = vmatmul.f32.gmra.mxu0 %v351
    %v618 = vpop.f32.mrf.mxu0
    %v619 = vadd.f32 %v599, %v618
    %620 = vdwg.mxu0
    %621 = vmatpush.msra.mxu0 %v239
    %622 = vmatpush.msra.mxu0 %v238
    %623 = vmatpush.msra.mxu0 %v237
    %624 = vmatpush.msra.mxu0 %v236
    %625 = vmatpush.msra.mxu0 %v235
    %626 = vmatpush.msra.mxu0 %v234
    %627 = vmatpush.msra.mxu0 %v233
    %628 = vmatpush.msra.mxu0 %v232
    %629 = vmatpush.msra.mxu0 %v231
    %630 = vmatpush.msra.mxu0 %v230
    %631 = vmatpush.msra.mxu0 %v229
    %632 = vmatpush.msra.mxu0 %v228
    %633 = vmatpush.msra.mxu0 %v227
    %634 = vmatpush.msra.mxu0 %v226
    %635 = vmatpush.msra.mxu0 %v225
    %636 = vmatpush.msra.mxu0 %v224
    %637 = vmatmul.f32.gmra.mxu0 %v352
    %v638 = vpop.f32.mrf.mxu0
    %v639 = vadd.f32 %v619, %v638
    %640 = vdwg.mxu0
    %641 = vmatpush.msra.mxu0 %v255
    %642 = vmatpush.msra.mxu0 %v254
    %643 = vmatpush.msra.mxu0 %v253
    %644 = vmatpush.msra.mxu0 %v252
    %645 = vmatpush.msra.mxu0 %v251
    %646 = vmatpush.msra.mxu0 %v250
    %647 = vmatpush.msra.mxu0 %v249
    %648 = vmatpush.msra.mxu0 %v248
    %649 = vmatpush.msra.mxu0 %v247
    %650 = vmatpush.msra.mxu0 %v246
    %651 = vmatpush.msra.mxu0 %v245
    %652 = vmatpush.msra.mxu0 %v244
    %653 = vmatpush.msra.mxu0 %v243
    %654 = vmatpush.msra.mxu0 %v242
    %655 = vmatpush.msra.mxu0 %v241
    %656 = vmatpush.msra.mxu0 %v240
    %657 = vmatmul.f32.gmra.mxu0 %v353
    %v658 = vpop.f32.mrf.mxu0
    %v659 = vadd.f32 %v639, %v658
    %660 = vdwg.mxu0
    %661 = vmatpush.msra.mxu0 %v271
    %662 = vmatpush.msra.mxu0 %v270
    %663 = vmatpush.msra.mxu0 %v269
    %664 = vmatpush.msra.mxu0 %v268
    %665 = vmatpush.msra.mxu0 %v267
    %666 = vmatpush.msra.mxu0 %v266
    %667 = vmatpush.msra.mxu0 %v265
    %668 = vmatpush.msra.mxu0 %v264
    %669 = vmatpush.msra.mxu0 %v263
    %670 = vmatpush.msra.mxu0 %v262
    %671 = vmatpush.msra.mxu0 %v261
    %672 = vmatpush.msra.mxu0 %v260
    %673 = vmatpush.msra.mxu0 %v259
    %674 = vmatpush.msra.mxu0 %v258
    %675 = vmatpush.msra.mxu0 %v257
    %676 = vmatpush.msra.mxu0 %v256
    %677 = vmatmul.f32.gmra.mxu0 %v354
    %v678 = vpop.f32.mrf.mxu0
    %v679 = vadd.f32 %v659, %v678
    %680 = vdwg.mxu0
    %681 = vmatpush.msra.mxu0 %v287
    %682 = vmatpush.msra.mxu0 %v286
    %683 = vmatpush.msra.mxu0 %v285
    %684 = vmatpush.msra.mxu0 %v284
    %685 = vmatpush.msra.mxu0 %v283
    %686 = vmatpush.msra.mxu0 %v282
    %687 = vmatpush.msra.mxu0 %v281
    %688 = vmatpush.msra.mxu0 %v280
    %689 = vmatpush.msra.mxu0 %v279
    %690 = vmatpush.msra.mxu0 %v278
    %691 = vmatpush.msra.mxu0 %v277
    %692 = vmatpush.msra.mxu0 %v276
    %693 = vmatpush.msra.mxu0 %v275
    %694 = vmatpush.msra.mxu0 %v274
    %695 = vmatpush.msra.mxu0 %v273
    %696 = vmatpush.msra.mxu0 %v272
    %697 = vmatmul.f32.gmra.mxu0 %v355
    %v698 = vpop.f32.mrf.mxu0
    %v699 = vadd.f32 %v679, %v698
    %700 = vdwg.mxu0
    %701 = vmatpush.msra.mxu0 %v303
    %702 = vmatpush.msra.mxu0 %v302
    %703 = vmatpush.msra.mxu0 %v301
    %704 = vmatpush.msra.mxu0 %v300
    %705 = vmatpush.msra.mxu0 %v299
    %706 = vmatpush.msra.mxu0 %v298
    %707 = vmatpush.msra.mxu0 %v297
    %708 = vmatpush.msra.mxu0 %v296
    %709 = vmatpush.msra.mxu0 %v295
    %710 = vmatpush.msra.mxu0 %v294
    %711 = vmatpush.msra.mxu0 %v293
    %712 = vmatpush.msra.mxu0 %v292
    %713 = vmatpush.msra.mxu0 %v291
    %714 = vmatpush.msra.mxu0 %v290
    %715 = vmatpush.msra.mxu0 %v289
    %716 = vmatpush.msra.mxu0 %v288
    %717 = vmatmul.f32.gmra.mxu0 %v357
    %v718 = vpop.f32.mrf.mxu0
    %v719 = vadd.f32 %v699, %v718
    %720 = vdwg.mxu0
    %721 = vmatpush.msra.mxu0 %v319
    %722 = vmatpush.msra.mxu0 %v318
    %723 = vmatpush.msra.mxu0 %v317
    %724 = vmatpush.msra.mxu0 %v316
    %725 = vmatpush.msra.mxu0 %v315
    %726 = vmatpush.msra.mxu0 %v314
    %727 = vmatpush.msra.mxu0 %v313
    %728 = vmatpush.msra.mxu0 %v312
    %729 = vmatpush.msra.mxu0 %v311
    %730 = vmatpush.msra.mxu0 %v310
    %731 = vmatpush.msra.mxu0 %v309
    %732 = vmatpush.msra.mxu0 %v308
    %733 = vmatpush.msra.mxu0 %v307
    %734 = vmatpush.msra.mxu0 %v306
    %735 = vmatpush.msra.mxu0 %v305
    %736 = vmatpush.msra.mxu0 %v304
    %737 = vmatmul.f32.gmra.mxu0 %v358
    %v738 = vpop.f32.mrf.mxu0
    %v739 = vadd.f32 %v719, %v738
    %740 = vdwg.mxu0
    %741 = vmatpush.msra.mxu0 0.0
    %742 = vmatpush.msra.mxu0 0.0
    %743 = vmatpush.msra.mxu0 0.0
    %744 = vmatpush.msra.mxu0 0.0
    %745 = vmatpush.msra.mxu0 0.0
    %746 = vmatpush.msra.mxu0 0.0
    %747 = vmatpush.msra.mxu0 0.0
    %748 = vmatpush.msra.mxu0 0.0
    %749 = vmatpush.msra.mxu0 0.0
    %750 = vmatpush.msra.mxu0 0.0
    %751 = vmatpush.msra.mxu0 %v325
    %752 = vmatpush.msra.mxu0 %v324
    %753 = vmatpush.msra.mxu0 %v323
    %754 = vmatpush.msra.mxu0 %v322
    %755 = vmatpush.msra.mxu0 %v321
    %756 = vmatpush.msra.mxu0 %v320
    %757 = vmatmul.f32.gmra.mxu0 %v379
    %v758 = vpop.f32.mrf.mxu0
    %v759 = vadd.f32 %v739, %v758
    %760 = vdwg.mxu0
    %v761 = vld [vmem:[%s3] sm:$0xff]
    %v762 = vld [vmem:[%s3 + $0x8] sm:$0xff]
    %v763 = vld [vmem:[%s3 + $0x10] sm:$0xff]
    %v764 = vld [vmem:[%s3 + $0x18] sm:$0xff]
    %v765 = vld [vmem:[%s3 + $0x20] sm:$0xff]
    %v766 = vld [vmem:[%s3 + $0x28] sm:$0xff]
    %v767 = vld [vmem:[%s3 + $0x30] sm:$0xff]
    %v768 = vld [vmem:[%s3 + $0x38] sm:$0xff]
    %v769 = vld [vmem:[%s3 + $0x40] sm:$0xff]
    %v770 = vld [vmem:[%s3 + $0x48] sm:$0xff]
    %v771 = vld [vmem:[%s3 + $0x50] sm:$0xff]
    %v772 = vld [vmem:[%s3 + $0x58] sm:$0xff]
    %v773 = vld [vmem:[%s3 + $0x60] sm:$0xff]
    %v774 = vld [vmem:[%s3 + $0x68] sm:$0xff]
    %v775 = vld [vmem:[%s3 + $0x70] sm:$0xff]
    %v776 = vld [vmem:[%s4] sm:$0x1]
    %v778 = vperm.slane %v776, 0
    %vm780 = vcmask 982016
    %v782 = vsel %vm780, %v759, 0
    %784 = vmatpush.msra.mxu0 0.0
    %785 = vmatpush.msra.mxu0 %v775
    %786 = vmatpush.msra.mxu0 %v774
    %787 = vmatpush.msra.mxu0 %v773
    %788 = vmatpush.msra.mxu0 %v772
    %789 = vmatpush.msra.mxu0 %v771
    %790 = vmatpush.msra.mxu0 %v770
    %791 = vmatpush.msra.mxu0 %v769
    %792 = vmatpush.msra.mxu0 %v768
    %793 = vmatpush.msra.mxu0 %v767
    %794 = vmatpush.msra.mxu0 %v766
    %795 = vmatpush.msra.mxu0 %v765
    %796 = vmatpush.msra.mxu0 %v764
    %797 = vmatpush.msra.mxu0 %v763
    %798 = vmatpush.msra.mxu0 %v762
    %799 = vmatpush.msra.mxu0 %v761
    %800 = vmatmul.f32.gmra.mxu0 %v782
    %v801 = vpop.f32.mrf.mxu0
    %v802 = vadd.f32 %v778, %v801
    %803 = vdwg.mxu0
    %v804 = vld [vmem:[%s5] sm:$0xff]
    %v805 = vld [vmem:[%s5 + $0x8] sm:$0xff]
    %v806 = vld [vmem:[%s5 + $0x10] sm:$0xff]
    %v807 = vld [vmem:[%s5 + $0x18] sm:$0xff]
    %v808 = vld [vmem:[%s5 + $0x20] sm:$0xff]
    %v809 = vld [vmem:[%s5 + $0x28] sm:$0xff]
    %v810 = vld [vmem:[%s5 + $0x30] sm:$0xff]
    %v811 = vld [vmem:[%s5 + $0x38] sm:$0xff]
    %v812 = vld [vmem:[%s5 + $0x40] sm:$0xff]
    %v813 = vld [vmem:[%s5 + $0x48] sm:$0xff]
    %v814 = vld [vmem:[%s5 + $0x50] sm:$0xf]
    %v815 = vld [vmem:[%s6] sm:$0x1]
    %v817 = vperm.slane %v815, 0
    %vm819 = vcmask 687104
    %v821 = vsel %vm819, %v802, 0
    %vm823 = vcmask 1043456
    %v825 = vsel %vm823, %v814, 0
    %827 = vmatpush.msra.mxu0 0.0
    %828 = vmatpush.msra.mxu0 0.0
    %829 = vmatpush.msra.mxu0 0.0
    %830 = vmatpush.msra.mxu0 0.0
    %831 = vmatpush.msra.mxu0 0.0
    %832 = vmatpush.msra.mxu0 %v825
    %833 = vmatpush.msra.mxu0 %v813
    %834 = vmatpush.msra.mxu0 %v812
    %835 = vmatpush.msra.mxu0 %v811
    %836 = vmatpush.msra.mxu0 %v810
    %837 = vmatpush.msra.mxu0 %v809
    %838 = vmatpush.msra.mxu0 %v808
    %839 = vmatpush.msra.mxu0 %v807
    %840 = vmatpush.msra.mxu0 %v806
    %841 = vmatpush.msra.mxu0 %v805
    %842 = vmatpush.msra.mxu0 %v804
    %843 = vmatmul.f32.gmra.mxu0 %v821
    %v844 = vpop.f32.mrf.mxu0
    %v845 = vadd.f32 %v817, %v844
    %846 = vdwg.mxu0
    %vm847 = vcmask 33792
    %v848 = vsel %vm847, %v845, -inf
    %849 = vmax.xlane.f32.xlu0 %v848
    %v850 = vpop.xlane.xlu0 %849
    %v851 = vsub.f32 %v845, %v850
    %v852 = vmul.f32 %v851, 1.442695
    %v853 = vpow.pop %v852
    %v854 = vsel %vm847, %v853, 0.0
    %855 = vadd.xlane.f32.xlu0 %v854
    %v856 = vpop.xlane.xlu0 %855
    %v857 = vrcp.pop %v856
    %v858 = vmul.f32 %v856, %v857
    %v859 = vsub.f32 1.0, %v858
    %v860 = vmul.f32 %v857, %v859
    %v861 = vadd.f32 %v857, %v860
    %vm862 = vweird.f32 %v856
    %vm863 = vweird.f32 %v857
    %vm864 = vmor %vm862, %vm863
    %v865 = vsel %vm864, %v857, %v861
    %v866 = vand.u32 2147483647, %v856
    %vm867 = vcmp.eq.f32.partialorder %v866, 8.507059e+37
    %v868 = vand.u32 %v856, 2147483648
    %v869 = vor.u32 1.1754944e-38, %v868
    %v870 = vsel %vm867, %v869, %v865
    %v871 = vmul.f32 %v853, %v870
    %872 = vst.msk [vmem:[#allocation2] sm:$0x3] %vm847, %v871
    // Predicated region
    $region30: #{simple_net_forward.5} parent=1 // pred_check
      _
    $region31: #{simple_net_forward.5} parent=1 // pred_check_branch
      %874 = sbr.rel (0) target = $region33
    $region32: #{simple_net_forward.5} parent=1 // pred_region
      %876 = vsyncadd [#allocation3], 0
      %s878 = sshll.u32 [#allocation2], 4
      %s879 = int_to_ptr.vmem [resolvable:$true] %s878
      %s880 = sshll.u32 %s7, 4
      %s881 = int_to_ptr.hbm [resolvable:$true] %s880
      %883 = dma.vmem_to_hbm [thread:$0]  %s879, 32, %s881, [#allocation3]
    $region33: #{simple_net_forward.5} parent=1 // pred_fallthru
      _
    // Predicated region
    $region34: #{simple_net_forward.5} parent=1 // pred_check
      _
    $region35: #{simple_net_forward.5} parent=1 // pred_check_branch
      %885 = sbr.rel (0) target = $region37
    $region36: #{simple_net_forward.5} parent=1 // pred_region
      %887 = dma.done [#allocation3], 32
    $region37: #{simple_net_forward.5} parent=1 // pred_fallthru
      _
    %888 = vsyncpa [#allocation3], 1

</llo_original>
